<compile_context>
chip_gen: v5e
topology: v5e:2x2
jax: 0.10.0
libtpu: 0.0.40
codegen_flags: <defaults>
</compile_context>

<pallas_src>
import functools

import jax
import jax.numpy as jnp
from jax import lax
from jax.experimental import pallas as pl
from jax.experimental.pallas import tpu as pltpu

EPS = 1e-5  # nn.LayerNorm default


def _layer_norm(x, gamma, beta):
    mu = jnp.mean(x, axis=-1, keepdims=True)
    var = jnp.mean((x - mu) ** 2, axis=-1, keepdims=True)
    return (x - mu) * lax.rsqrt(var + EPS) * gamma + beta


def expert_kernel(mask_ref, x_ref,
                  ln1_g_ref, ln1_b_ref,
                  wq_ref, bq_ref, wk_ref, bk_ref, wv_ref, bv_ref,
                  wo_ref, bo_ref,
                  ln2_g_ref, ln2_b_ref,
                  w1_ref, b1_ref, w2_ref, b2_ref,
                  out_ref,
                  y1_cache, kT_cache, v_cache, o_scratch,
                  *, num_heads, q_tile):
    j = pl.program_id(1)
    S = x_ref.shape[1]
    E = x_ref.shape[2]
    dh = E // num_heads

    # ---- once per batch element: cache LN1(x), K^T and V (full-width GEMMs) ----
    @pl.when(j == 0)
    def _():
        y_full = _layer_norm(x_ref[0], ln1_g_ref[0], ln1_b_ref[0]).astype(jnp.bfloat16)
        y1_cache[...] = y_full                                            # (S, E)
        k_full = (jnp.dot(y_full, wk_ref[...],
                          preferred_element_type=jnp.float32) + bk_ref[0])
        kT_cache[...] = jnp.transpose(k_full).astype(jnp.bfloat16)        # (E, S)
        v_full = (jnp.dot(y_full, wv_ref[...],
                          preferred_element_type=jnp.float32) + bv_ref[0])
        v_cache[...] = v_full.astype(jnp.bfloat16)                        # (S, E)

    # ---- current query tile ----
    row0 = pl.multiple_of(j * q_tile, q_tile)
    x_tile = x_ref[0, pl.ds(row0, q_tile), :]            # (tq, E) f32
    y1 = y1_cache[pl.ds(row0, q_tile), :]                # (tq, E) bf16 (cached LN1)

    # Batched Q projection: one full-width GEMM (1/sqrt(dh) folded into wq/bq).
    q_all = (jnp.dot(y1, wq_ref[...], preferred_element_type=jnp.float32)
             + bq_ref[0]).astype(jnp.bfloat16)           # (tq, E)

    # Hoist the additive-mask broadcast out of the head loop.
    mask_b = jnp.broadcast_to(mask_ref[0], (q_tile, S))  # (tq, S)

    # ---- per-head attention: statically unrolled, static lane slices ----
    for h in range(num_heads):
        lo = h * dh
        q_h = q_all[:, lo:lo + dh]                                        # (tq, dh)
        s = jnp.dot(q_h, kT_cache[lo:lo + dh, :],
                    preferred_element_type=jnp.float32) + mask_b          # (tq, S)
        s = s - jnp.max(s, axis=-1, keepdims=True)
        p = jnp.exp(s)
        denom = jnp.maximum(jnp.sum(p, axis=-1, keepdims=True), 1e-20)
        p = p * pl.reciprocal(denom, approx=True)
        o_h = jnp.dot(p.astype(jnp.bfloat16), v_cache[:, lo:lo + dh],
                      preferred_element_type=jnp.float32)                 # (tq, dh)
        o_scratch[:, lo:lo + dh] = o_h.astype(jnp.bfloat16)

    # Single full-width output projection (K = E, not dh).
    attn = (jnp.dot(o_scratch[...], wo_ref[...],
                    preferred_element_type=jnp.float32) + bo_ref[0])      # (tq, E)
    x_mid = x_tile + attn                                # dropout1 = identity

    # ---- feed-forward block (pre-norm), statically tiled/unrolled over F ----
    y2 = _layer_norm(x_mid, ln2_g_ref[0], ln2_b_ref[0]).astype(jnp.bfloat16)
    n_f = w1_ref.shape[0]
    ffn = jnp.zeros((q_tile, E), jnp.float32)
    for i in range(n_f):
        h1 = jnp.dot(y2, w1_ref[i], preferred_element_type=jnp.float32) + b1_ref[i]
        h1 = jnp.maximum(h1, 0.0).astype(jnp.bfloat16)   # ReLU (default activation)
        ffn = ffn + jnp.dot(h1, w2_ref[i], preferred_element_type=jnp.float32)

    out_ref[0] = x_mid + ffn + b2_ref[0]                 # dropout2 = identity


def _largest_tile(n, cap, align):
    """Largest divisor of n that is <= cap, preferring multiples of `align`."""
    if n <= cap:
        return n
    best = 1
    for t in range(cap, 0, -1):
        if n % t == 0:
            if t % align == 0:
                return t
            if best == 1:
                best = t          # largest plain divisor as fallback (never > cap)
    return best


def _pick_vmem_limit():
    try:
        cap = int(pltpu.get_tpu_info().vmem_capacity_bytes)
    except Exception:
        cap = 64 * 1024 * 1024
    # leave headroom for the compiler's internal scratch; cap at 100 MiB
    return max(32 * 1024 * 1024, min(cap - 8 * 1024 * 1024, 100 * 1024 * 1024))


def expert_forward(x, params, key_padding_mask=None, *, num_heads,
                   q_tile_cap=256, f_tile_cap=1024):
    """x: (B, S, E) float32; key_padding_mask: optional (B, S) bool (True = pad)."""
    B, S, E = x.shape
    F = params["w1_t"].shape[1]
    assert E % num_heads == 0
    dh = E // num_heads
    scale = 1.0 / (dh ** 0.5)

    q_tile = _largest_tile(S, q_tile_cap, 16)   # 16: bf16 sublane packing
    f_tile = _largest_tile(F, f_tile_cap, 128)
    n_s = S // q_tile
    n_f = F // f_tile

    # ---- host-side weight re-layout: full-width slabs + F tiles + bf16 cast ----
    wqkv = params["wqkv_t"]                          # (E, 3E), columns = [q, k, v]
    bqkv = params["bqkv"]                            # (1, 3E)

    wq = (wqkv[:, :E] * scale).astype(jnp.bfloat16)  # scale folded in
    bq = bqkv[:, :E] * scale
    wk = wqkv[:, E:2 * E].astype(jnp.bfloat16)
    bk = bqkv[:, E:2 * E]
    wv = wqkv[:, 2 * E:].astype(jnp.bfloat16)
    bv = bqkv[:, 2 * E:]
    wo = params["wout_t"].astype(jnp.bfloat16)       # (E, E)
    bo = params["bout"]

    w1 = params["w1_t"].reshape(E, n_f, f_tile).transpose(1, 0, 2).astype(jnp.bfloat16)
    b1 = params["b1"].reshape(1, n_f, f_tile).transpose(1, 0, 2)   # (n_f, 1, fT)
    w2 = params["w2_t"].reshape(n_f, f_tile, E).astype(jnp.bfloat16)
    b2 = params["b2"]

    if key_padding_mask is None:
        mask = jnp.zeros((B, 1, S), jnp.float32)
    else:
        mask = jnp.where(key_padding_mask, -1e9, 0.0).astype(jnp.float32).reshape(B, 1, S)

    weights = [params["ln1_g"], params["ln1_b"],
               wq, bq, wk, bk, wv, bv, wo, bo,
               params["ln2_g"], params["ln2_b"],
               w1, b1, w2, b2]

    def const_spec(arr):
        nd = arr.ndim
        # TODO(synk): on v7x mark these pipeline_mode=pl.Buffered(1) (block index
        #             never changes) to halve the resident weight footprint.
        return pl.BlockSpec(arr.shape, lambda b, j, _nd=nd: (0,) * _nd)

    in_specs = [pl.BlockSpec((1, 1, S), lambda b, j: (b, 0, 0)),   # mask (per batch)
                pl.BlockSpec((1, S, E), lambda b, j: (b, 0, 0))]   # x, resident across S-tiles
    in_specs += [const_spec(w) for w in weights]

    kernel = functools.partial(expert_kernel, num_heads=num_heads, q_tile=q_tile)

    return pl.pallas_call(
        kernel,
        out_shape=jax.ShapeDtypeStruct((B, S, E), jnp.float32),
        grid_spec=pltpu.PrefetchScalarGridSpec(
            num_scalar_prefetch=0,
            grid=(B, n_s),
            in_specs=in_specs,
            out_specs=pl.BlockSpec((1, q_tile, E), lambda b, j: (b, j, 0)),
            scratch_shapes=[pltpu.VMEM((S, E), jnp.bfloat16),        # LN1(x) cache
                            pltpu.VMEM((E, S), jnp.bfloat16),        # K^T cache (lane-dense)
                            pltpu.VMEM((S, E), jnp.bfloat16),        # V cache (lane-dense)
                            pltpu.VMEM((q_tile, E), jnp.bfloat16)],  # concat'd head outputs
        ),
        compiler_params=pltpu.CompilerParams(
            dimension_semantics=("parallel", "arbitrary"),
            vmem_limit_bytes=_pick_vmem_limit(),
        ),
    )(mask, x, *weights)


# ------------------------- pure-JAX reference (f32) -------------------------
def expert_reference(x, params, key_padding_mask=None, *, num_heads):
    B, S, E = x.shape
    dh = E // num_heads
    scale = 1.0 / (dh ** 0.5)
    if key_padding_mask is None:
        add_mask = jnp.zeros((B, 1, 1, S), jnp.float32)
    else:
        add_mask = jnp.where(key_padding_mask, -1e9, 0.0)[:, None, None, :]

    def ln(v, g, b):
        mu = v.mean(-1, keepdims=True)
        var = ((v - mu) ** 2).mean(-1, keepdims=True)
        return (v - mu) * lax.rsqrt(var + EPS) * g[0] + b[0]

    y = ln(x, params["ln1_g"], params["ln1_b"])
    qkv = y @ params["wqkv_t"] + params["bqkv"][0]
    q, k, v = jnp.split(qkv, 3, axis=-1)
    q = q.reshape(B, S, num_heads, dh).transpose(0, 2, 1, 3) * scale
    k = k.reshape(B, S, num_heads, dh).transpose(0, 2, 1, 3)
    v = v.reshape(B, S, num_heads, dh).transpose(0, 2, 1, 3)
    s = jnp.einsum("bhqd,bhkd->bhqk", q, k) + add_mask
    p = jax.nn.softmax(s, axis=-1)
    a = jnp.einsum("bhqk,bhkd->bhqd", p, v).transpose(0, 2, 1, 3).reshape(B, S, E)
    x = x + (a @ params["wout_t"] + params["bout"][0])

    y2 = ln(x, params["ln2_g"], params["ln2_b"])
    h1 = jnp.maximum(y2 @ params["w1_t"] + params["b1"][0], 0.0)
    return x + (h1 @ params["w2_t"] + params["b2"][0])


def make_params(key, E, F):
    ks = jax.random.split(key, 6)
    s = 0.05
    return {
        "ln1_g": jnp.ones((1, E), jnp.float32),
        "ln1_b": jnp.zeros((1, E), jnp.float32),
        "wqkv_t": s * jax.random.normal(ks[0], (E, 3 * E), jnp.float32),
        "bqkv": s * jax.random.normal(ks[1], (1, 3 * E), jnp.float32),
        "wout_t": s * jax.random.normal(ks[2], (E, E), jnp.float32),
        "bout": s * jax.random.normal(ks[3], (1, E), jnp.float32),
        "ln2_g": jnp.ones((1, E), jnp.float32),
        "ln2_b": jnp.zeros((1, E), jnp.float32),
        "w1_t": s * jax.random.normal(ks[4], (E, F), jnp.float32),
        "b1": jnp.zeros((1, F), jnp.float32),
        "w2_t": s * jax.random.normal(ks[5], (F, E), jnp.float32),
        "b2": jnp.zeros((1, E), jnp.float32),
    }


if __name__ == "__main__":
    B, S, E, H, F = 2, 8, 32, 4, 64
    key = jax.random.PRNGKey(0)
    kx, kp = jax.random.split(key)
    x = jax.random.normal(kx, (B, S, E), jnp.float32)
    params = make_params(kp, E, F)

    # no mask
    out = jax.block_until_ready(expert_forward(x, params, key_padding_mask=None, num_heads=H))
    ref = expert_reference(x, params, key_padding_mask=None, num_heads=H)
    assert out.shape == (B, S, E)
    assert jnp.max(jnp.abs(out - ref)) < 2e-2   # bf16 GEMM operands, f32 accumulation

    # key-padding mask (last two positions padded)
    kpm = jnp.zeros((B, S), bool).at[:, -2:].set(True)
    out_m = jax.block_until_ready(expert_forward(x, params, key_padding_mask=kpm, num_heads=H))
    ref_m = expert_reference(x, params, key_padding_mask=kpm, num_heads=H)
    assert jnp.max(jnp.abs(out_m - ref_m)) < 2e-2

    print("KERNEL_OK")
</pallas_src>

<mosaic_0001>
module attributes {stable_mosaic.version = 11 : i64} {
  func.func @expert_kernel(%arg0: i32, %arg1: i32, %arg2: memref<1x1x8xf32, #tpu.memory_space<vmem>>, %arg3: memref<1x8x32xf32, #tpu.memory_space<vmem>>, %arg4: memref<1x32xf32, #tpu.memory_space<vmem>>, %arg5: memref<1x32xf32, #tpu.memory_space<vmem>>, %arg6: memref<32x32xbf16, #tpu.memory_space<vmem>>, %arg7: memref<1x32xf32, #tpu.memory_space<vmem>>, %arg8: memref<32x32xbf16, #tpu.memory_space<vmem>>, %arg9: memref<1x32xf32, #tpu.memory_space<vmem>>, %arg10: memref<32x32xbf16, #tpu.memory_space<vmem>>, %arg11: memref<1x32xf32, #tpu.memory_space<vmem>>, %arg12: memref<32x32xbf16, #tpu.memory_space<vmem>>, %arg13: memref<1x32xf32, #tpu.memory_space<vmem>>, %arg14: memref<1x32xf32, #tpu.memory_space<vmem>>, %arg15: memref<1x32xf32, #tpu.memory_space<vmem>>, %arg16: memref<1x32x64xbf16, #tpu.memory_space<vmem>>, %arg17: memref<1x1x64xf32, #tpu.memory_space<vmem>>, %arg18: memref<1x64x32xbf16, #tpu.memory_space<vmem>>, %arg19: memref<1x32xf32, #tpu.memory_space<vmem>>, %arg20: memref<1x8x32xf32, #tpu.memory_space<vmem>>, %arg21: memref<8x32xbf16, #tpu.memory_space<vmem>>, %arg22: memref<32x8xbf16, #tpu.memory_space<vmem>>, %arg23: memref<8x32xbf16, #tpu.memory_space<vmem>>, %arg24: memref<8x32xbf16, #tpu.memory_space<vmem>>) attributes {dimension_semantics = [#tpu.dimension_semantics<parallel>, #tpu.dimension_semantics<arbitrary>], iteration_bounds = array<i64: 2, 1>, scalar_prefetch = 0 : i64, scratch_operands = 4 : i64, tpu.core_type = #tpu.core_type<tc>, window_params = [{transform_indices = @transform_0, window_bounds = array<i64: 1, 1, 8>}, {transform_indices = @transform_1, window_bounds = array<i64: 1, 8, 32>}, {pipeline_mode = #tpu.pipeline_mode<synchronous>, transform_indices = @transform_2, window_bounds = array<i64: 1, 32>}, {pipeline_mode = #tpu.pipeline_mode<synchronous>, transform_indices = @transform_3, window_bounds = array<i64: 1, 32>}, {pipeline_mode = #tpu.pipeline_mode<synchronous>, transform_indices = @transform_4, window_bounds = array<i64: 32, 32>}, {pipeline_mode = #tpu.pipeline_mode<synchronous>, transform_indices = @transform_5, window_bounds = array<i64: 1, 32>}, {pipeline_mode = #tpu.pipeline_mode<synchronous>, transform_indices = @transform_6, window_bounds = array<i64: 32, 32>}, {pipeline_mode = #tpu.pipeline_mode<synchronous>, transform_indices = @transform_7, window_bounds = array<i64: 1, 32>}, {pipeline_mode = #tpu.pipeline_mode<synchronous>, transform_indices = @transform_8, window_bounds = array<i64: 32, 32>}, {pipeline_mode = #tpu.pipeline_mode<synchronous>, transform_indices = @transform_9, window_bounds = array<i64: 1, 32>}, {pipeline_mode = #tpu.pipeline_mode<synchronous>, transform_indices = @transform_10, window_bounds = array<i64: 32, 32>}, {pipeline_mode = #tpu.pipeline_mode<synchronous>, transform_indices = @transform_11, window_bounds = array<i64: 1, 32>}, {pipeline_mode = #tpu.pipeline_mode<synchronous>, transform_indices = @transform_12, window_bounds = array<i64: 1, 32>}, {pipeline_mode = #tpu.pipeline_mode<synchronous>, transform_indices = @transform_13, window_bounds = array<i64: 1, 32>}, {pipeline_mode = #tpu.pipeline_mode<synchronous>, transform_indices = @transform_14, window_bounds = array<i64: 1, 32, 64>}, {pipeline_mode = #tpu.pipeline_mode<synchronous>, transform_indices = @transform_15, window_bounds = array<i64: 1, 1, 64>}, {pipeline_mode = #tpu.pipeline_mode<synchronous>, transform_indices = @transform_16, window_bounds = array<i64: 1, 64, 32>}, {pipeline_mode = #tpu.pipeline_mode<synchronous>, transform_indices = @transform_17, window_bounds = array<i64: 1, 32>}, {transform_indices = @transform_18, window_bounds = array<i64: 1, 8, 32>}]} {
    %c0_i32 = arith.constant 0 : i32
    %0 = arith.cmpi eq, %arg1, %c0_i32 : i32
    %1 = arith.extui %0 : i1 to i32
    %c0_i32_0 = arith.constant 0 : i32
    %2 = arith.cmpi ne, %1, %c0_i32_0 : i32
    scf.if %2 {
      %c0_85 = arith.constant 0 : index
      %c0_86 = arith.constant 0 : index
      %c0_87 = arith.constant 0 : index
      %168 = vector.load %arg3[%c0_85, %c0_86, %c0_87] : memref<1x8x32xf32, #tpu.memory_space<vmem>>, vector<1x8x32xf32>
      %169 = vector.shape_cast %168 : vector<1x8x32xf32> to vector<8x32xf32>
      %c0_88 = arith.constant 0 : index
      %c0_89 = arith.constant 0 : index
      %170 = vector.load %arg4[%c0_88, %c0_89] : memref<1x32xf32, #tpu.memory_space<vmem>>, vector<1x32xf32>
      %171 = vector.shape_cast %170 : vector<1x32xf32> to vector<32xf32>
      %c0_90 = arith.constant 0 : index
      %c0_91 = arith.constant 0 : index
      %172 = vector.load %arg5[%c0_90, %c0_91] : memref<1x32xf32, #tpu.memory_space<vmem>>, vector<1x32xf32>
      %173 = vector.shape_cast %172 : vector<1x32xf32> to vector<32xf32>
      %cst_92 = arith.constant dense<0.000000e+00> : vector<8xf32>
      %174 = vector.multi_reduction <add>, %169, %cst_92 [1] : vector<8x32xf32> to vector<8xf32>
      %175 = vector.shape_cast %174 : vector<8xf32> to vector<8x1xf32>
      %cst_93 = arith.constant 3.200000e+01 : f32
      %176 = vector.broadcast %cst_93 : f32 to vector<8x1xf32>
      %177 = arith.divf %175, %176 : vector<8x1xf32>
      %178 = vector.broadcast %177 : vector<8x1xf32> to vector<8x32xf32>
      %179 = arith.subf %169, %178 : vector<8x32xf32>
      %180 = arith.mulf %179, %179 : vector<8x32xf32>
      %cst_94 = arith.constant dense<0.000000e+00> : vector<8xf32>
      %181 = vector.multi_reduction <add>, %180, %cst_94 [1] : vector<8x32xf32> to vector<8xf32>
      %182 = vector.shape_cast %181 : vector<8xf32> to vector<8x1xf32>
      %cst_95 = arith.constant 3.200000e+01 : f32
      %183 = vector.broadcast %cst_95 : f32 to vector<8x1xf32>
      %184 = arith.divf %182, %183 : vector<8x1xf32>
      %185 = vector.broadcast %177 : vector<8x1xf32> to vector<8x32xf32>
      %186 = arith.subf %169, %185 : vector<8x32xf32>
      %cst_96 = arith.constant 9.99999974E-6 : f32
      %187 = vector.broadcast %cst_96 : f32 to vector<8x1xf32>
      %188 = arith.addf %184, %187 : vector<8x1xf32>
      %189 = math.rsqrt %188 : vector<8x1xf32>
      %190 = vector.broadcast %189 : vector<8x1xf32> to vector<8x32xf32>
      %191 = arith.mulf %186, %190 : vector<8x32xf32>
      %192 = vector.shape_cast %171 : vector<32xf32> to vector<1x32xf32>
      %193 = vector.broadcast %192 : vector<1x32xf32> to vector<8x32xf32>
      %194 = arith.mulf %191, %193 : vector<8x32xf32>
      %195 = vector.shape_cast %173 : vector<32xf32> to vector<1x32xf32>
      %196 = vector.broadcast %195 : vector<1x32xf32> to vector<8x32xf32>
      %197 = arith.addf %194, %196 : vector<8x32xf32>
      %198 = arith.truncf %197 : vector<8x32xf32> to vector<8x32xbf16>
      %c0_97 = arith.constant 0 : index
      %c0_98 = arith.constant 0 : index
      %199 = vector.load %arg21[%c0_97, %c0_98] : memref<8x32xbf16, #tpu.memory_space<vmem>>, vector<8x32xbf16>
      tpu.vector_store %arg21[%c0_97, %c0_98], %198 {strides = array<i32>} : memref<8x32xbf16, #tpu.memory_space<vmem>>, vector<8x32xbf16>,
      %c0_99 = arith.constant 0 : index
      %c0_100 = arith.constant 0 : index
      %200 = vector.load %arg8[%c0_99, %c0_100] : memref<32x32xbf16, #tpu.memory_space<vmem>>, vector<32x32xbf16>
      %cst_101 = arith.constant dense<0.000000e+00> : vector<8x32xf32>
      %201 = tpu.matmul %198, %200, %cst_101 {dimension_numbers = #tpu.dot_dimension_numbers<[1], [0], [0], [1], [0, 0, 1, 1], [], []>} : vector<8x32xbf16>, vector<32x32xbf16>, vector<8x32xf32> -> vector<8x32xf32>
      %c0_102 = arith.constant 0 : index
      %c0_103 = arith.constant 0 : index
      %202 = vector.load %arg9[%c0_102, %c0_103] : memref<1x32xf32, #tpu.memory_space<vmem>>, vector<1x32xf32>
      %203 = vector.shape_cast %202 : vector<1x32xf32> to vector<32xf32>
      %204 = vector.shape_cast %203 : vector<32xf32> to vector<1x32xf32>
      %205 = vector.broadcast %204 : vector<1x32xf32> to vector<8x32xf32>
      %206 = arith.addf %201, %205 : vector<8x32xf32>
      %207 = tpu.transpose %206, [1, 0] : vector<8x32xf32> -> vector<32x8xf32>
      %208 = arith.truncf %207 : vector<32x8xf32> to vector<32x8xbf16>
      %c0_104 = arith.constant 0 : index
      %c0_105 = arith.constant 0 : index
      %209 = vector.load %arg22[%c0_104, %c0_105] : memref<32x8xbf16, #tpu.memory_space<vmem>>, vector<32x8xbf16>
      tpu.vector_store %arg22[%c0_104, %c0_105], %208 {strides = array<i32>} : memref<32x8xbf16, #tpu.memory_space<vmem>>, vector<32x8xbf16>,
      %c0_106 = arith.constant 0 : index
      %c0_107 = arith.constant 0 : index
      %210 = vector.load %arg10[%c0_106, %c0_107] : memref<32x32xbf16, #tpu.memory_space<vmem>>, vector<32x32xbf16>
      %cst_108 = arith.constant dense<0.000000e+00> : vector<8x32xf32>
      %211 = tpu.matmul %198, %210, %cst_108 {dimension_numbers = #tpu.dot_dimension_numbers<[1], [0], [0], [1], [0, 0, 1, 1], [], []>} : vector<8x32xbf16>, vector<32x32xbf16>, vector<8x32xf32> -> vector<8x32xf32>
      %c0_109 = arith.constant 0 : index
      %c0_110 = arith.constant 0 : index
      %212 = vector.load %arg11[%c0_109, %c0_110] : memref<1x32xf32, #tpu.memory_space<vmem>>, vector<1x32xf32>
      %213 = vector.shape_cast %212 : vector<1x32xf32> to vector<32xf32>
      %214 = vector.shape_cast %213 : vector<32xf32> to vector<1x32xf32>
      %215 = vector.broadcast %214 : vector<1x32xf32> to vector<8x32xf32>
      %216 = arith.addf %211, %215 : vector<8x32xf32>
      %217 = arith.truncf %216 : vector<8x32xf32> to vector<8x32xbf16>
      %c0_111 = arith.constant 0 : index
      %c0_112 = arith.constant 0 : index
      %218 = vector.load %arg23[%c0_111, %c0_112] : memref<8x32xbf16, #tpu.memory_space<vmem>>, vector<8x32xbf16>
      tpu.vector_store %arg23[%c0_111, %c0_112], %217 {strides = array<i32>} : memref<8x32xbf16, #tpu.memory_space<vmem>>, vector<8x32xbf16>,
    } else {
    }
    %c8_i32 = arith.constant 8 : i32
    %3 = arith.muli %arg1, %c8_i32 : i32
    %4 = tpu.assume_multiple %3, 8 : i32
    %c0 = arith.constant 0 : index
    %5 = arith.index_cast %4 : i32 to index
    %c0_1 = arith.constant 0 : index
    %6 = vector.load %arg3[%c0, %5, %c0_1] : memref<1x8x32xf32, #tpu.memory_space<vmem>>, vector<1x8x32xf32>
    %7 = vector.shape_cast %6 : vector<1x8x32xf32> to vector<8x32xf32>
    %8 = arith.index_cast %4 : i32 to index
    %c0_2 = arith.constant 0 : index
    %9 = vector.load %arg21[%8, %c0_2] : memref<8x32xbf16, #tpu.memory_space<vmem>>, vector<8x32xbf16>
    %c0_3 = arith.constant 0 : index
    %c0_4 = arith.constant 0 : index
    %10 = vector.load %arg6[%c0_3, %c0_4] : memref<32x32xbf16, #tpu.memory_space<vmem>>, vector<32x32xbf16>
    %cst = arith.constant dense<0.000000e+00> : vector<8x32xf32>
    %11 = tpu.matmul %9, %10, %cst {dimension_numbers = #tpu.dot_dimension_numbers<[1], [0], [0], [1], [0, 0, 1, 1], [], []>} : vector<8x32xbf16>, vector<32x32xbf16>, vector<8x32xf32> -> vector<8x32xf32>
    %c0_5 = arith.constant 0 : index
    %c0_6 = arith.constant 0 : index
    %12 = vector.load %arg7[%c0_5, %c0_6] : memref<1x32xf32, #tpu.memory_space<vmem>>, vector<1x32xf32>
    %13 = vector.shape_cast %12 : vector<1x32xf32> to vector<32xf32>
    %14 = vector.shape_cast %13 : vector<32xf32> to vector<1x32xf32>
    %15 = vector.broadcast %14 : vector<1x32xf32> to vector<8x32xf32>
    %16 = arith.addf %11, %15 : vector<8x32xf32>
    %17 = arith.truncf %16 : vector<8x32xf32> to vector<8x32xbf16>
    %c0_7 = arith.constant 0 : index
    %c0_8 = arith.constant 0 : index
    %c0_9 = arith.constant 0 : index
    %18 = vector.load %arg2[%c0_7, %c0_8, %c0_9] : memref<1x1x8xf32, #tpu.memory_space<vmem>>, vector<1x1x8xf32>
    %19 = vector.shape_cast %18 : vector<1x1x8xf32> to vector<1x8xf32>
    %20 = vector.shape_cast %19 : vector<1x8xf32> to vector<1x8xf32>
    %21 = vector.broadcast %20 : vector<1x8xf32> to vector<8x8xf32>
    %22 = vector.extract_strided_slice %17 {offsets = [0, 0], sizes = [8, 8], strides = [1, 1]} : vector<8x32xbf16> to vector<8x8xbf16>
    %c0_10 = arith.constant 0 : index
    %c0_11 = arith.constant 0 : index
    %23 = vector.load %arg22[%c0_10, %c0_11] : memref<32x8xbf16, #tpu.memory_space<vmem>>, vector<8x8xbf16>
    %cst_12 = arith.constant dense<0.000000e+00> : vector<8x8xf32>
    %24 = tpu.matmul %22, %23, %cst_12 {dimension_numbers = #tpu.dot_dimension_numbers<[1], [0], [0], [1], [0, 0, 1, 1], [], []>} : vector<8x8xbf16>, vector<8x8xbf16>, vector<8x8xf32> -> vector<8x8xf32>
    %25 = arith.addf %24, %21 : vector<8x8xf32>
    %cst_13 = arith.constant dense<0xFF800000> : vector<8xf32>
    %26 = vector.multi_reduction <maximumf>, %25, %cst_13 [1] : vector<8x8xf32> to vector<8xf32>
    %27 = vector.shape_cast %26 : vector<8xf32> to vector<8x1xf32>
    %28 = vector.broadcast %27 : vector<8x1xf32> to vector<8x8xf32>
    %29 = arith.subf %25, %28 : vector<8x8xf32>
    %30 = math.exp %29 : vector<8x8xf32>
    %cst_14 = arith.constant dense<0.000000e+00> : vector<8xf32>
    %31 = vector.multi_reduction <add>, %30, %cst_14 [1] : vector<8x8xf32> to vector<8xf32>
    %32 = vector.shape_cast %31 : vector<8xf32> to vector<8x1xf32>
    %cst_15 = arith.constant 9.99999968E-21 : f32
    %33 = vector.broadcast %cst_15 : f32 to vector<8x1xf32>
    %34 = arith.maximumf %32, %33 : vector<8x1xf32>
    %35 = tpu.reciprocal %34 {approx = true} : vector<8x1xf32> -> vector<8x1xf32>
    %36 = vector.broadcast %35 : vector<8x1xf32> to vector<8x8xf32>
    %37 = arith.mulf %30, %36 : vector<8x8xf32>
    %38 = arith.truncf %37 : vector<8x8xf32> to vector<8x8xbf16>
    %c0_16 = arith.constant 0 : index
    %c0_17 = arith.constant 0 : index
    %39 = vector.load %arg23[%c0_16, %c0_17] : memref<8x32xbf16, #tpu.memory_space<vmem>>, vector<8x8xbf16>
    %cst_18 = arith.constant dense<0.000000e+00> : vector<8x8xf32>
    %40 = tpu.matmul %38, %39, %cst_18 {dimension_numbers = #tpu.dot_dimension_numbers<[1], [0], [0], [1], [0, 0, 1, 1], [], []>} : vector<8x8xbf16>, vector<8x8xbf16>, vector<8x8xf32> -> vector<8x8xf32>
    %41 = arith.truncf %40 : vector<8x8xf32> to vector<8x8xbf16>
    %c0_19 = arith.constant 0 : index
    %c0_20 = arith.constant 0 : index
    %42 = vector.load %arg24[%c0_19, %c0_20] : memref<8x32xbf16, #tpu.memory_space<vmem>>, vector<8x8xbf16>
    tpu.vector_store %arg24[%c0_19, %c0_20], %41 {strides = array<i32>} : memref<8x32xbf16, #tpu.memory_space<vmem>>, vector<8x8xbf16>,
    %43 = vector.extract_strided_slice %17 {offsets = [0, 8], sizes = [8, 8], strides = [1, 1]} : vector<8x32xbf16> to vector<8x8xbf16>
    %c8 = arith.constant 8 : index
    %c0_21 = arith.constant 0 : index
    %44 = vector.load %arg22[%c8, %c0_21] : memref<32x8xbf16, #tpu.memory_space<vmem>>, vector<8x8xbf16>
    %cst_22 = arith.constant dense<0.000000e+00> : vector<8x8xf32>
    %45 = tpu.matmul %43, %44, %cst_22 {dimension_numbers = #tpu.dot_dimension_numbers<[1], [0], [0], [1], [0, 0, 1, 1], [], []>} : vector<8x8xbf16>, vector<8x8xbf16>, vector<8x8xf32> -> vector<8x8xf32>
    %46 = arith.addf %45, %21 : vector<8x8xf32>
    %cst_23 = arith.constant dense<0xFF800000> : vector<8xf32>
    %47 = vector.multi_reduction <maximumf>, %46, %cst_23 [1] : vector<8x8xf32> to vector<8xf32>
    %48 = vector.shape_cast %47 : vector<8xf32> to vector<8x1xf32>
    %49 = vector.broadcast %48 : vector<8x1xf32> to vector<8x8xf32>
    %50 = arith.subf %46, %49 : vector<8x8xf32>
    %51 = math.exp %50 : vector<8x8xf32>
    %cst_24 = arith.constant dense<0.000000e+00> : vector<8xf32>
    %52 = vector.multi_reduction <add>, %51, %cst_24 [1] : vector<8x8xf32> to vector<8xf32>
    %53 = vector.shape_cast %52 : vector<8xf32> to vector<8x1xf32>
    %cst_25 = arith.constant 9.99999968E-21 : f32
    %54 = vector.broadcast %cst_25 : f32 to vector<8x1xf32>
    %55 = arith.maximumf %53, %54 : vector<8x1xf32>
    %56 = tpu.reciprocal %55 {approx = true} : vector<8x1xf32> -> vector<8x1xf32>
    %57 = vector.broadcast %56 : vector<8x1xf32> to vector<8x8xf32>
    %58 = arith.mulf %51, %57 : vector<8x8xf32>
    %59 = arith.truncf %58 : vector<8x8xf32> to vector<8x8xbf16>
    %c0_26 = arith.constant 0 : index
    %c8_27 = arith.constant 8 : index
    %60 = vector.load %arg23[%c0_26, %c8_27] : memref<8x32xbf16, #tpu.memory_space<vmem>>, vector<8x8xbf16>
    %cst_28 = arith.constant dense<0.000000e+00> : vector<8x8xf32>
    %61 = tpu.matmul %59, %60, %cst_28 {dimension_numbers = #tpu.dot_dimension_numbers<[1], [0], [0], [1], [0, 0, 1, 1], [], []>} : vector<8x8xbf16>, vector<8x8xbf16>, vector<8x8xf32> -> vector<8x8xf32>
    %62 = arith.truncf %61 : vector<8x8xf32> to vector<8x8xbf16>
    %c0_29 = arith.constant 0 : index
    %c8_30 = arith.constant 8 : index
    %63 = vector.load %arg24[%c0_29, %c8_30] : memref<8x32xbf16, #tpu.memory_space<vmem>>, vector<8x8xbf16>
    tpu.vector_store %arg24[%c0_29, %c8_30], %62 {strides = array<i32>} : memref<8x32xbf16, #tpu.memory_space<vmem>>, vector<8x8xbf16>,
    %64 = vector.extract_strided_slice %17 {offsets = [0, 16], sizes = [8, 8], strides = [1, 1]} : vector<8x32xbf16> to vector<8x8xbf16>
    %c16 = arith.constant 16 : index
    %c0_31 = arith.constant 0 : index
    %65 = vector.load %arg22[%c16, %c0_31] : memref<32x8xbf16, #tpu.memory_space<vmem>>, vector<8x8xbf16>
    %cst_32 = arith.constant dense<0.000000e+00> : vector<8x8xf32>
    %66 = tpu.matmul %64, %65, %cst_32 {dimension_numbers = #tpu.dot_dimension_numbers<[1], [0], [0], [1], [0, 0, 1, 1], [], []>} : vector<8x8xbf16>, vector<8x8xbf16>, vector<8x8xf32> -> vector<8x8xf32>
    %67 = arith.addf %66, %21 : vector<8x8xf32>
    %cst_33 = arith.constant dense<0xFF800000> : vector<8xf32>
    %68 = vector.multi_reduction <maximumf>, %67, %cst_33 [1] : vector<8x8xf32> to vector<8xf32>
    %69 = vector.shape_cast %68 : vector<8xf32> to vector<8x1xf32>
    %70 = vector.broadcast %69 : vector<8x1xf32> to vector<8x8xf32>
    %71 = arith.subf %67, %70 : vector<8x8xf32>
    %72 = math.exp %71 : vector<8x8xf32>
    %cst_34 = arith.constant dense<0.000000e+00> : vector<8xf32>
    %73 = vector.multi_reduction <add>, %72, %cst_34 [1] : vector<8x8xf32> to vector<8xf32>
    %74 = vector.shape_cast %73 : vector<8xf32> to vector<8x1xf32>
    %cst_35 = arith.constant 9.99999968E-21 : f32
    %75 = vector.broadcast %cst_35 : f32 to vector<8x1xf32>
    %76 = arith.maximumf %74, %75 : vector<8x1xf32>
    %77 = tpu.reciprocal %76 {approx = true} : vector<8x1xf32> -> vector<8x1xf32>
    %78 = vector.broadcast %77 : vector<8x1xf32> to vector<8x8xf32>
    %79 = arith.mulf %72, %78 : vector<8x8xf32>
    %80 = arith.truncf %79 : vector<8x8xf32> to vector<8x8xbf16>
    %c0_36 = arith.constant 0 : index
    %c16_37 = arith.constant 16 : index
    %81 = vector.load %arg23[%c0_36, %c16_37] : memref<8x32xbf16, #tpu.memory_space<vmem>>, vector<8x8xbf16>
    %cst_38 = arith.constant dense<0.000000e+00> : vector<8x8xf32>
    %82 = tpu.matmul %80, %81, %cst_38 {dimension_numbers = #tpu.dot_dimension_numbers<[1], [0], [0], [1], [0, 0, 1, 1], [], []>} : vector<8x8xbf16>, vector<8x8xbf16>, vector<8x8xf32> -> vector<8x8xf32>
    %83 = arith.truncf %82 : vector<8x8xf32> to vector<8x8xbf16>
    %c0_39 = arith.constant 0 : index
    %c16_40 = arith.constant 16 : index
    %84 = vector.load %arg24[%c0_39, %c16_40] : memref<8x32xbf16, #tpu.memory_space<vmem>>, vector<8x8xbf16>
    tpu.vector_store %arg24[%c0_39, %c16_40], %83 {strides = array<i32>} : memref<8x32xbf16, #tpu.memory_space<vmem>>, vector<8x8xbf16>,
    %85 = vector.extract_strided_slice %17 {offsets = [0, 24], sizes = [8, 8], strides = [1, 1]} : vector<8x32xbf16> to vector<8x8xbf16>
    %c24 = arith.constant 24 : index
    %c0_41 = arith.constant 0 : index
    %86 = vector.load %arg22[%c24, %c0_41] : memref<32x8xbf16, #tpu.memory_space<vmem>>, vector<8x8xbf16>
    %cst_42 = arith.constant dense<0.000000e+00> : vector<8x8xf32>
    %87 = tpu.matmul %85, %86, %cst_42 {dimension_numbers = #tpu.dot_dimension_numbers<[1], [0], [0], [1], [0, 0, 1, 1], [], []>} : vector<8x8xbf16>, vector<8x8xbf16>, vector<8x8xf32> -> vector<8x8xf32>
    %88 = arith.addf %87, %21 : vector<8x8xf32>
    %cst_43 = arith.constant dense<0xFF800000> : vector<8xf32>
    %89 = vector.multi_reduction <maximumf>, %88, %cst_43 [1] : vector<8x8xf32> to vector<8xf32>
    %90 = vector.shape_cast %89 : vector<8xf32> to vector<8x1xf32>
    %91 = vector.broadcast %90 : vector<8x1xf32> to vector<8x8xf32>
    %92 = arith.subf %88, %91 : vector<8x8xf32>
    %93 = math.exp %92 : vector<8x8xf32>
    %cst_44 = arith.constant dense<0.000000e+00> : vector<8xf32>
    %94 = vector.multi_reduction <add>, %93, %cst_44 [1] : vector<8x8xf32> to vector<8xf32>
    %95 = vector.shape_cast %94 : vector<8xf32> to vector<8x1xf32>
    %cst_45 = arith.constant 9.99999968E-21 : f32
    %96 = vector.broadcast %cst_45 : f32 to vector<8x1xf32>
    %97 = arith.maximumf %95, %96 : vector<8x1xf32>
    %98 = tpu.reciprocal %97 {approx = true} : vector<8x1xf32> -> vector<8x1xf32>
    %99 = vector.broadcast %98 : vector<8x1xf32> to vector<8x8xf32>
    %100 = arith.mulf %93, %99 : vector<8x8xf32>
    %101 = arith.truncf %100 : vector<8x8xf32> to vector<8x8xbf16>
    %c0_46 = arith.constant 0 : index
    %c24_47 = arith.constant 24 : index
    %102 = vector.load %arg23[%c0_46, %c24_47] : memref<8x32xbf16, #tpu.memory_space<vmem>>, vector<8x8xbf16>
    %cst_48 = arith.constant dense<0.000000e+00> : vector<8x8xf32>
    %103 = tpu.matmul %101, %102, %cst_48 {dimension_numbers = #tpu.dot_dimension_numbers<[1], [0], [0], [1], [0, 0, 1, 1], [], []>} : vector<8x8xbf16>, vector<8x8xbf16>, vector<8x8xf32> -> vector<8x8xf32>
    %104 = arith.truncf %103 : vector<8x8xf32> to vector<8x8xbf16>
    %c0_49 = arith.constant 0 : index
    %c24_50 = arith.constant 24 : index
    %105 = vector.load %arg24[%c0_49, %c24_50] : memref<8x32xbf16, #tpu.memory_space<vmem>>, vector<8x8xbf16>
    tpu.vector_store %arg24[%c0_49, %c24_50], %104 {strides = array<i32>} : memref<8x32xbf16, #tpu.memory_space<vmem>>, vector<8x8xbf16>,
    %c0_51 = arith.constant 0 : index
    %c0_52 = arith.constant 0 : index
    %106 = vector.load %arg24[%c0_51, %c0_52] : memref<8x32xbf16, #tpu.memory_space<vmem>>, vector<8x32xbf16>
    %c0_53 = arith.constant 0 : index
    %c0_54 = arith.constant 0 : index
    %107 = vector.load %arg12[%c0_53, %c0_54] : memref<32x32xbf16, #tpu.memory_space<vmem>>, vector<32x32xbf16>
    %cst_55 = arith.constant dense<0.000000e+00> : vector<8x32xf32>
    %108 = tpu.matmul %106, %107, %cst_55 {dimension_numbers = #tpu.dot_dimension_numbers<[1], [0], [0], [1], [0, 0, 1, 1], [], []>} : vector<8x32xbf16>, vector<32x32xbf16>, vector<8x32xf32> -> vector<8x32xf32>
    %c0_56 = arith.constant 0 : index
    %c0_57 = arith.constant 0 : index
    %109 = vector.load %arg13[%c0_56, %c0_57] : memref<1x32xf32, #tpu.memory_space<vmem>>, vector<1x32xf32>
    %110 = vector.shape_cast %109 : vector<1x32xf32> to vector<32xf32>
    %111 = vector.shape_cast %110 : vector<32xf32> to vector<1x32xf32>
    %112 = vector.broadcast %111 : vector<1x32xf32> to vector<8x32xf32>
    %113 = arith.addf %108, %112 : vector<8x32xf32>
    %114 = arith.addf %7, %113 : vector<8x32xf32>
    %c0_58 = arith.constant 0 : index
    %c0_59 = arith.constant 0 : index
    %115 = vector.load %arg14[%c0_58, %c0_59] : memref<1x32xf32, #tpu.memory_space<vmem>>, vector<1x32xf32>
    %116 = vector.shape_cast %115 : vector<1x32xf32> to vector<32xf32>
    %c0_60 = arith.constant 0 : index
    %c0_61 = arith.constant 0 : index
    %117 = vector.load %arg15[%c0_60, %c0_61] : memref<1x32xf32, #tpu.memory_space<vmem>>, vector<1x32xf32>
    %118 = vector.shape_cast %117 : vector<1x32xf32> to vector<32xf32>
    %cst_62 = arith.constant dense<0.000000e+00> : vector<8xf32>
    %119 = vector.multi_reduction <add>, %114, %cst_62 [1] : vector<8x32xf32> to vector<8xf32>
    %120 = vector.shape_cast %119 : vector<8xf32> to vector<8x1xf32>
    %cst_63 = arith.constant 3.200000e+01 : f32
    %121 = vector.broadcast %cst_63 : f32 to vector<8x1xf32>
    %122 = arith.divf %120, %121 : vector<8x1xf32>
    %123 = vector.broadcast %122 : vector<8x1xf32> to vector<8x32xf32>
    %124 = arith.subf %114, %123 : vector<8x32xf32>
    %125 = arith.mulf %124, %124 : vector<8x32xf32>
    %cst_64 = arith.constant dense<0.000000e+00> : vector<8xf32>
    %126 = vector.multi_reduction <add>, %125, %cst_64 [1] : vector<8x32xf32> to vector<8xf32>
    %127 = vector.shape_cast %126 : vector<8xf32> to vector<8x1xf32>
    %cst_65 = arith.constant 3.200000e+01 : f32
    %128 = vector.broadcast %cst_65 : f32 to vector<8x1xf32>
    %129 = arith.divf %127, %128 : vector<8x1xf32>
    %130 = vector.broadcast %122 : vector<8x1xf32> to vector<8x32xf32>
    %131 = arith.subf %114, %130 : vector<8x32xf32>
    %cst_66 = arith.constant 9.99999974E-6 : f32
    %132 = vector.broadcast %cst_66 : f32 to vector<8x1xf32>
    %133 = arith.addf %129, %132 : vector<8x1xf32>
    %134 = math.rsqrt %133 : vector<8x1xf32>
    %135 = vector.broadcast %134 : vector<8x1xf32> to vector<8x32xf32>
    %136 = arith.mulf %131, %135 : vector<8x32xf32>
    %137 = vector.shape_cast %116 : vector<32xf32> to vector<1x32xf32>
    %138 = vector.broadcast %137 : vector<1x32xf32> to vector<8x32xf32>
    %139 = arith.mulf %136, %138 : vector<8x32xf32>
    %140 = vector.shape_cast %118 : vector<32xf32> to vector<1x32xf32>
    %141 = vector.broadcast %140 : vector<1x32xf32> to vector<8x32xf32>
    %142 = arith.addf %139, %141 : vector<8x32xf32>
    %143 = arith.truncf %142 : vector<8x32xf32> to vector<8x32xbf16>
    %cst_67 = arith.constant 0.000000e+00 : f32
    %144 = vector.broadcast %cst_67 : f32 to vector<8x32xf32>
    %c0_68 = arith.constant 0 : index
    %c0_69 = arith.constant 0 : index
    %c0_70 = arith.constant 0 : index
    %145 = vector.load %arg16[%c0_68, %c0_69, %c0_70] : memref<1x32x64xbf16, #tpu.memory_space<vmem>>, vector<1x32x64xbf16>
    %146 = vector.shape_cast %145 : vector<1x32x64xbf16> to vector<32x64xbf16>
    %cst_71 = arith.constant dense<0.000000e+00> : vector<8x64xf32>
    %147 = tpu.matmul %143, %146, %cst_71 {dimension_numbers = #tpu.dot_dimension_numbers<[1], [0], [0], [1], [0, 0, 1, 1], [], []>} : vector<8x32xbf16>, vector<32x64xbf16>, vector<8x64xf32> -> vector<8x64xf32>
    %c0_72 = arith.constant 0 : index
    %c0_73 = arith.constant 0 : index
    %c0_74 = arith.constant 0 : index
    %148 = vector.load %arg17[%c0_72, %c0_73, %c0_74] : memref<1x1x64xf32, #tpu.memory_space<vmem>>, vector<1x1x64xf32>
    %149 = vector.shape_cast %148 : vector<1x1x64xf32> to vector<1x64xf32>
    %150 = vector.broadcast %149 : vector<1x64xf32> to vector<8x64xf32>
    %151 = arith.addf %147, %150 : vector<8x64xf32>
    %cst_75 = arith.constant 0.000000e+00 : f32
    %152 = vector.broadcast %cst_75 : f32 to vector<8x64xf32>
    %153 = arith.maximumf %151, %152 : vector<8x64xf32>
    %154 = arith.truncf %153 : vector<8x64xf32> to vector<8x64xbf16>
    %c0_76 = arith.constant 0 : index
    %c0_77 = arith.constant 0 : index
    %c0_78 = arith.constant 0 : index
    %155 = vector.load %arg18[%c0_76, %c0_77, %c0_78] : memref<1x64x32xbf16, #tpu.memory_space<vmem>>, vector<1x64x32xbf16>
    %156 = vector.shape_cast %155 : vector<1x64x32xbf16> to vector<64x32xbf16>
    %cst_79 = arith.constant dense<0.000000e+00> : vector<8x32xf32>
    %157 = tpu.matmul %154, %156, %cst_79 {dimension_numbers = #tpu.dot_dimension_numbers<[1], [0], [0], [1], [0, 0, 1, 1], [], []>} : vector<8x64xbf16>, vector<64x32xbf16>, vector<8x32xf32> -> vector<8x32xf32>
    %158 = arith.addf %144, %157 : vector<8x32xf32>
    %159 = arith.addf %114, %158 : vector<8x32xf32>
    %c0_80 = arith.constant 0 : index
    %c0_81 = arith.constant 0 : index
    %160 = vector.load %arg19[%c0_80, %c0_81] : memref<1x32xf32, #tpu.memory_space<vmem>>, vector<1x32xf32>
    %161 = vector.shape_cast %160 : vector<1x32xf32> to vector<32xf32>
    %162 = vector.shape_cast %161 : vector<32xf32> to vector<1x32xf32>
    %163 = vector.broadcast %162 : vector<1x32xf32> to vector<8x32xf32>
    %164 = arith.addf %159, %163 : vector<8x32xf32>
    %c0_82 = arith.constant 0 : index
    %c0_83 = arith.constant 0 : index
    %c0_84 = arith.constant 0 : index
    %165 = vector.load %arg20[%c0_82, %c0_83, %c0_84] : memref<1x8x32xf32, #tpu.memory_space<vmem>>, vector<1x8x32xf32>
    %166 = vector.shape_cast %165 : vector<1x8x32xf32> to vector<8x32xf32>
    %167 = vector.shape_cast %164 : vector<8x32xf32> to vector<1x8x32xf32>
    tpu.vector_store %arg20[%c0_82, %c0_83, %c0_84], %167 {strides = array<i32>} : memref<1x8x32xf32, #tpu.memory_space<vmem>>, vector<1x8x32xf32>,
    return
  }
  func.func @transform_0(%arg0: i32, %arg1: i32) -> (i32, i32, i32) {
    %c0_i32 = arith.constant 0 : i32
    %c0_i32_0 = arith.constant 0 : i32
    %c0_i32_1 = arith.constant 0 : i32
    return %arg0, %c0_i32, %c0_i32_0 : i32, i32, i32
  }
  func.func @transform_1(%arg0: i32, %arg1: i32) -> (i32, i32, i32) {
    %c0_i32 = arith.constant 0 : i32
    %c0_i32_0 = arith.constant 0 : i32
    %c0_i32_1 = arith.constant 0 : i32
    return %arg0, %c0_i32, %c0_i32_0 : i32, i32, i32
  }
  func.func @transform_2(%arg0: i32, %arg1: i32) -> (i32, i32) {
    %c0_i32 = arith.constant 0 : i32
    %c0_i32_0 = arith.constant 0 : i32
    %c0_i32_1 = arith.constant 0 : i32
    return %c0_i32, %c0_i32_0 : i32, i32
  }
  func.func @transform_3(%arg0: i32, %arg1: i32) -> (i32, i32) {
    %c0_i32 = arith.constant 0 : i32
    %c0_i32_0 = arith.constant 0 : i32
    %c0_i32_1 = arith.constant 0 : i32
    return %c0_i32, %c0_i32_0 : i32, i32
  }
  func.func @transform_4(%arg0: i32, %arg1: i32) -> (i32, i32) {
    %c0_i32 = arith.constant 0 : i32
    %c0_i32_0 = arith.constant 0 : i32
    %c0_i32_1 = arith.constant 0 : i32
    return %c0_i32, %c0_i32_0 : i32, i32
  }
  func.func @transform_5(%arg0: i32, %arg1: i32) -> (i32, i32) {
    %c0_i32 = arith.constant 0 : i32
    %c0_i32_0 = arith.constant 0 : i32
    %c0_i32_1 = arith.constant 0 : i32
    return %c0_i32, %c0_i32_0 : i32, i32
  }
  func.func @transform_6(%arg0: i32, %arg1: i32) -> (i32, i32) {
    %c0_i32 = arith.constant 0 : i32
    %c0_i32_0 = arith.constant 0 : i32
    %c0_i32_1 = arith.constant 0 : i32
    return %c0_i32, %c0_i32_0 : i32, i32
  }
  func.func @transform_7(%arg0: i32, %arg1: i32) -> (i32, i32) {
    %c0_i32 = arith.constant 0 : i32
    %c0_i32_0 = arith.constant 0 : i32
    %c0_i32_1 = arith.constant 0 : i32
    return %c0_i32, %c0_i32_0 : i32, i32
  }
  func.func @transform_8(%arg0: i32, %arg1: i32) -> (i32, i32) {
    %c0_i32 = arith.constant 0 : i32
    %c0_i32_0 = arith.constant 0 : i32
    %c0_i32_1 = arith.constant 0 : i32
    return %c0_i32, %c0_i32_0 : i32, i32
  }
  func.func @transform_9(%arg0: i32, %arg1: i32) -> (i32, i32) {
    %c0_i32 = arith.constant 0 : i32
    %c0_i32_0 = arith.constant 0 : i32
    %c0_i32_1 = arith.constant 0 : i32
    return %c0_i32, %c0_i32_0 : i32, i32
  }
  func.func @transform_10(%arg0: i32, %arg1: i32) -> (i32, i32) {
    %c0_i32 = arith.constant 0 : i32
    %c0_i32_0 = arith.constant 0 : i32
    %c0_i32_1 = arith.constant 0 : i32
    return %c0_i32, %c0_i32_0 : i32, i32
  }
  func.func @transform_11(%arg0: i32, %arg1: i32) -> (i32, i32) {
    %c0_i32 = arith.constant 0 : i32
    %c0_i32_0 = arith.constant 0 : i32
    %c0_i32_1 = arith.constant 0 : i32
    return %c0_i32, %c0_i32_0 : i32, i32
  }
  func.func @transform_12(%arg0: i32, %arg1: i32) -> (i32, i32) {
    %c0_i32 = arith.constant 0 : i32
    %c0_i32_0 = arith.constant 0 : i32
    %c0_i32_1 = arith.constant 0 : i32
    return %c0_i32, %c0_i32_0 : i32, i32
  }
  func.func @transform_13(%arg0: i32, %arg1: i32) -> (i32, i32) {
    %c0_i32 = arith.constant 0 : i32
    %c0_i32_0 = arith.constant 0 : i32
    %c0_i32_1 = arith.constant 0 : i32
    return %c0_i32, %c0_i32_0 : i32, i32
  }
  func.func @transform_14(%arg0: i32, %arg1: i32) -> (i32, i32, i32) {
    %c0_i32 = arith.constant 0 : i32
    %c0_i32_0 = arith.constant 0 : i32
    %c0_i32_1 = arith.constant 0 : i32
    %c0_i32_2 = arith.constant 0 : i32
    return %c0_i32, %c0_i32_0, %c0_i32_1 : i32, i32, i32
  }
  func.func @transform_15(%arg0: i32, %arg1: i32) -> (i32, i32, i32) {
    %c0_i32 = arith.constant 0 : i32
    %c0_i32_0 = arith.constant 0 : i32
    %c0_i32_1 = arith.constant 0 : i32
    %c0_i32_2 = arith.constant 0 : i32
    return %c0_i32, %c0_i32_0, %c0_i32_1 : i32, i32, i32
  }
  func.func @transform_16(%arg0: i32, %arg1: i32) -> (i32, i32, i32) {
    %c0_i32 = arith.constant 0 : i32
    %c0_i32_0 = arith.constant 0 : i32
    %c0_i32_1 = arith.constant 0 : i32
    %c0_i32_2 = arith.constant 0 : i32
    return %c0_i32, %c0_i32_0, %c0_i32_1 : i32, i32, i32
  }
  func.func @transform_17(%arg0: i32, %arg1: i32) -> (i32, i32) {
    %c0_i32 = arith.constant 0 : i32
    %c0_i32_0 = arith.constant 0 : i32
    %c0_i32_1 = arith.constant 0 : i32
    return %c0_i32, %c0_i32_0 : i32, i32
  }
  func.func @transform_18(%arg0: i32, %arg1: i32) -> (i32, i32, i32) {
    %c0_i32 = arith.constant 0 : i32
    %c0_i32_0 = arith.constant 0 : i32
    return %arg0, %arg1, %c0_i32 : i32, i32, i32
  }
}

</mosaic_0001>

<llo_original>
// kernel: tpu_custom_call.1
$region0: #{tpu_custom_call.1}
  #allocation0 [shape = 'u32[]', space=smem, size = 0x4, offset = 0x4, fixed_abs, tag = 'smem constant byte address 0x4 - core index']
  #allocation1 [shape = 'u32[72,128]{1,0:T(1,128)}', space=vmem, size = 0x9000, scoped, tag = 'internal scratch']
  #allocation2 [shape = 'bf16[8,32]{1,0:T(8,128)(2,1)}', space=vmem, size = 0x800, scoped, tag = 'scratch operand']
  #allocation3 [shape = 'bf16[32,8]{1,0:T(8,128)(2,1)}', space=vmem, size = 0x2000, scoped, tag = 'scratch operand']
  #allocation4 [shape = 'bf16[8,32]{1,0:T(8,128)(2,1)}', space=vmem, size = 0x800, scoped, tag = 'scratch operand']
  #allocation5 [shape = 'bf16[8,32]{1,0:T(8,128)(2,1)}', space=vmem, size = 0x800, scoped, tag = 'scratch operand']
  %s0 = inlined_call_operand.hbm [shape: f32[2,1,8], index: 0, kind: input, shape index: {}]
  %s1 = inlined_call_operand.vmem [shape: f32[2,8,32], index: 1, kind: input, shape index: {}]
  %s2 = inlined_call_operand.vmem [shape: f32[1,32], index: 2, kind: input, shape index: {}]
  %s3 = inlined_call_operand.vmem [shape: f32[1,32], index: 3, kind: input, shape index: {}]
  %s4 = inlined_call_operand.vmem [shape: bf16[32,32], index: 4, kind: input, shape index: {}]
  %s5 = inlined_call_operand.vmem [shape: f32[1,32], index: 5, kind: input, shape index: {}]
  %s6 = inlined_call_operand.vmem [shape: bf16[32,32], index: 6, kind: input, shape index: {}]
  %s7 = inlined_call_operand.vmem [shape: f32[1,32], index: 7, kind: input, shape index: {}]
  %s8 = inlined_call_operand.hbm [shape: bf16[32,32], index: 8, kind: input, shape index: {}]
  %s9 = inlined_call_operand.vmem [shape: f32[1,32], index: 9, kind: input, shape index: {}]
  %s10 = inlined_call_operand.hbm [shape: bf16[32,32], index: 10, kind: input, shape index: {}]
  %s11 = inlined_call_operand.vmem [shape: f32[1,32], index: 11, kind: input, shape index: {}]
  %s12 = inlined_call_operand.vmem [shape: f32[1,32], index: 12, kind: input, shape index: {}]
  %s13 = inlined_call_operand.vmem [shape: f32[1,32], index: 13, kind: input, shape index: {}]
  %s14 = inlined_call_operand.hbm [shape: bf16[1,32,64], index: 14, kind: input, shape index: {}]
  %s15 = inlined_call_operand.vmem [shape: f32[1,1,64], index: 15, kind: input, shape index: {}]
  %s16 = inlined_call_operand.vmem [shape: bf16[1,64,32], index: 16, kind: input, shape index: {}]
  %s17 = inlined_call_operand.vmem [shape: f32[1,32], index: 17, kind: input, shape index: {}]
  %s18 = inlined_call_operand.hbm [shape: f32[2,8,32], index: 18, kind: output, shape index: {}]
  %s19 = sld [smem:[#allocation0]]
  $region125: #{tpu_custom_call.1} parent=0
    _
  %s21 = ssub.s32 1, %s19
  %s22 = scalar_select 0, %s21, %s19
  $region1: #{tpu_custom_call.1} parent=0
    #allocation6 [shape = 'u8[1024]{0}', space=vmem, size = 0x400, scoped, tag = 'input window, operand 0']
    #allocation7 [shape = 's32[2]{0}', space=sflag, size = 0x8, scoped, tag = 'scoped memory for tpu_custom_call.1']
    #allocation8 [shape = 's32[2]{0}', space=sflag, size = 0x8, scoped, tag = 'scoped memory for tpu_custom_call.1']
    #allocation9 [shape = 'u8[8192]{0}', space=vmem, size = 0x2000, scoped, tag = 'input window, operand 8, single buffered']
    #allocation10 [shape = 's32[1]{0}', space=sflag, size = 0x4, scoped, tag = 'scoped memory for tpu_custom_call.1']
    #allocation11 [shape = 'u8[8192]{0}', space=vmem, size = 0x2000, scoped, tag = 'input window, operand 10, single buffered']
    #allocation12 [shape = 'u8[8192]{0}', space=vmem, size = 0x2000, scoped, tag = 'input window, operand 14, single buffered']
    #allocation13 [shape = 's32[1]{0}', space=sflag, size = 0x4, scoped, tag = 'scoped memory for tpu_custom_call.1']
    #allocation14 [shape = 'u8[8192]{0}', space=vmem, size = 0x2000, scoped, tag = 'output window, operand 0']
    %23 = vsyncpa [#allocation7], 0
    %s24 = scalar_lea.sflag [#allocation7], 1
    %25 = vsyncpa %s24, 0
    %26 = vsyncpa [#allocation10], 0
    %27 = vsyncpa [#allocation13], 0
    %28 = vsyncpa [#allocation8], 0
    %s29 = scalar_lea.sflag [#allocation8], 1
    %30 = vsyncpa %s29, 0
    loop: start=0, step=1, limit=4
    $region2: #{tpu_custom_call.1} parent=1 // loop_pre_header
      _
    $region3: #{tpu_custom_call.1} parent=1 // loop_header
      %s32 = sphi 0, %s36
      %p33 = scmp.ge.s32.totalorder %s32, 4
      %s39 = sphi 0, %s51
      %s40 = sphi 0, %s47
      %s41 = sphi 0, %s39
      %s42 = sphi 0, %s40
      %s43 = sphi 0, %s41
      %s44 = sphi 0, %s42
      %s54 = sphi 0, %s56
      %s57 = sphi 0, %s54
      %s58 = sphi 0, %s57
      %s74 = sphi 0, %s58
      %s80 = sphi 0, %s82
      %s83 = sphi 0, %s80
      %s84 = sphi 0, %s83
      %s100 = sphi 0, %s84
      %s104 = sphi 0, %s104
      %s106 = sphi 0, %s104
      %s107 = sphi 0, %s106
      %s121 = sphi 0, %s107
      %s125 = sphi 0, %s125
      %s127 = sphi 0, %s125
      %s128 = sphi 0, %s127
      %s142 = sphi 0, %s128
      %s146 = sphi 0, %s146
      %s148 = sphi 0, %s146
      %s149 = sphi 0, %s148
      %s163 = sphi 0, %s149
      %s167 = sphi 0, %s167
      %s169 = sphi 0, %s167
      %s170 = sphi 0, %s169
      %s184 = sphi 0, %s170
      %s188 = sphi 0, %s188
      %s190 = sphi 0, %s188
      %s191 = sphi 0, %s190
      %s205 = sphi 0, %s191
      %s209 = sphi 0, %s209
      %s211 = sphi 0, %s209
      %s212 = sphi 0, %s211
      %s226 = sphi 0, %s212
      %s230 = sphi 0, %s230
      %s232 = sphi 0, %s230
      %s233 = sphi 0, %s232
      %s247 = sphi 0, %s233
      %s251 = sphi 0, %s251
      %s253 = sphi 0, %s251
      %s254 = sphi 0, %s253
      %s268 = sphi 0, %s254
      %s272 = sphi 0, %s272
      %s274 = sphi 0, %s272
      %s275 = sphi 0, %s274
      %s289 = sphi 0, %s275
      %s293 = sphi 0, %s293
      %s295 = sphi 0, %s293
      %s296 = sphi 0, %s295
      %s310 = sphi 0, %s296
      %s314 = sphi 0, %s314
      %s316 = sphi 0, %s314
      %s317 = sphi 0, %s316
      %s331 = sphi 0, %s317
      %s335 = sphi 0, %s335
      %s337 = sphi 0, %s335
      %s338 = sphi 0, %s337
      %s352 = sphi 0, %s338
      %s356 = sphi 0, %s356
      %s358 = sphi 0, %s356
      %s359 = sphi 0, %s358
      %s373 = sphi 0, %s359
      %s377 = sphi 0, %s377
      %s379 = sphi 0, %s377
      %s380 = sphi 0, %s379
      %s394 = sphi 0, %s380
      %s398 = sphi 0, %s398
      %s400 = sphi 0, %s398
      %s401 = sphi 0, %s400
      %s415 = sphi 0, %s401
      %s419 = sphi 0, %s419
      %s421 = sphi 0, %s419
      %s422 = sphi 0, %s421
      %s436 = sphi 0, %s422
      %s444 = sphi 0, %s446
      %s447 = sphi 0, %s444
      %s448 = sphi 0, %s447
      %s464 = sphi 0, %s448
    $region4: #{tpu_custom_call.1} parent=1 // loop_header_branch
      %35 = sbr.rel (%p33) target = $region8
    $region5: #{tpu_custom_call.1} parent=1 // loop_body
      %s37 = ssub.s32 %s32, 1
      %s38 = ssub.s32 %s32, 2
      %s45 = sadd.s32 1, %s40
      %p46 = scmp.ge.s32.totalorder %s45, 1
      %s47 = scalar_select %p46, 0, %s45
      %s48 = sadd.s32 1, %s39
      %s49 = scalar_select %p46, %s48, %s39
      %p50 = scmp.ge.s32.totalorder %s49, 2
      %s51 = scalar_select %p50, 0, %s49
      %s52 = ssub.s32 %s39, %s51
      %p53 = scmp.eq.s32.totalorder %s52, 0
      %s55 = sadd.s32 %s54, 1
      %s56 = scalar_select %p53, %s54, %s55
      %p59 = pneg %p53
      %p60 = scmp.eq.s32.totalorder %s32, 1
      %p61 = por %p59, %p60
      %p62 = scmp.ne.s32.totalorder %s54, %s57
      %p63 = scmp.eq.s32.totalorder %s32, 0
      %p64 = por %p62, %p63
      %p65 = scmp.ne.s32.totalorder %s54, %s57
      %p66 = scmp.eq.s32.totalorder %s37, 1
      %p67 = por %p65, %p66
      %p68 = scmp.ne.s32.totalorder %s57, %s58
      %p69 = scmp.eq.s32.totalorder %s37, 0
      %p70 = por %p68, %p69
      %p71 = scmp.ne.s32.totalorder %s57, %s58
      %p72 = scmp.eq.s32.totalorder %s38, 1
      %p73 = por %p71, %p72
      %p75 = scmp.ne.s32.totalorder %s58, %s74
      %p76 = scmp.eq.s32.totalorder %s38, 0
      %p77 = por %p75, %p76
      %s78 = ssub.s32 %s39, %s51
      %p79 = scmp.eq.s32.totalorder %s78, 0
      %s81 = sadd.s32 %s80, 1
      %s82 = scalar_select %p79, %s80, %s81
      %p85 = pneg %p79
      %p86 = scmp.eq.s32.totalorder %s32, 1
      %p87 = por %p85, %p86
      %p88 = scmp.ne.s32.totalorder %s80, %s83
      %p89 = scmp.eq.s32.totalorder %s32, 0
      %p90 = por %p88, %p89
      %p91 = scmp.ne.s32.totalorder %s80, %s83
      %p92 = scmp.eq.s32.totalorder %s37, 1
      %p93 = por %p91, %p92
      %p94 = scmp.ne.s32.totalorder %s83, %s84
      %p95 = scmp.eq.s32.totalorder %s37, 0
      %p96 = por %p94, %p95
      %p97 = scmp.ne.s32.totalorder %s83, %s84
      %p98 = scmp.eq.s32.totalorder %s38, 1
      %p99 = por %p97, %p98
      %p101 = scmp.ne.s32.totalorder %s84, %s100
      %p102 = scmp.eq.s32.totalorder %s38, 0
      %p103 = por %p101, %p102
      %s105 = sadd.s32 %s104, 1
      %p108 = scmp.eq.s32.totalorder %s32, 1
      %p109 = scmp.ne.s32.totalorder %s104, %s106
      %p110 = scmp.eq.s32.totalorder %s32, 0
      %p111 = por %p109, %p110
      %p112 = scmp.ne.s32.totalorder %s104, %s106
      %p113 = scmp.eq.s32.totalorder %s37, 1
      %p114 = por %p112, %p113
      %p115 = scmp.ne.s32.totalorder %s106, %s107
      %p116 = scmp.eq.s32.totalorder %s37, 0
      %p117 = por %p115, %p116
      %p118 = scmp.ne.s32.totalorder %s106, %s107
      %p119 = scmp.eq.s32.totalorder %s38, 1
      %p120 = por %p118, %p119
      %p122 = scmp.ne.s32.totalorder %s107, %s121
      %p123 = scmp.eq.s32.totalorder %s38, 0
      %p124 = por %p122, %p123
      %s126 = sadd.s32 %s125, 1
      %p129 = scmp.eq.s32.totalorder %s32, 1
      %p130 = scmp.ne.s32.totalorder %s125, %s127
      %p131 = scmp.eq.s32.totalorder %s32, 0
      %p132 = por %p130, %p131
      %p133 = scmp.ne.s32.totalorder %s125, %s127
      %p134 = scmp.eq.s32.totalorder %s37, 1
      %p135 = por %p133, %p134
      %p136 = scmp.ne.s32.totalorder %s127, %s128
      %p137 = scmp.eq.s32.totalorder %s37, 0
      %p138 = por %p136, %p137
      %p139 = scmp.ne.s32.totalorder %s127, %s128
      %p140 = scmp.eq.s32.totalorder %s38, 1
      %p141 = por %p139, %p140
      %p143 = scmp.ne.s32.totalorder %s128, %s142
      %p144 = scmp.eq.s32.totalorder %s38, 0
      %p145 = por %p143, %p144
      %s147 = sadd.s32 %s146, 1
      %p150 = scmp.eq.s32.totalorder %s32, 1
      %p151 = scmp.ne.s32.totalorder %s146, %s148
      %p152 = scmp.eq.s32.totalorder %s32, 0
      %p153 = por %p151, %p152
      %p154 = scmp.ne.s32.totalorder %s146, %s148
      %p155 = scmp.eq.s32.totalorder %s37, 1
      %p156 = por %p154, %p155
      %p157 = scmp.ne.s32.totalorder %s148, %s149
      %p158 = scmp.eq.s32.totalorder %s37, 0
      %p159 = por %p157, %p158
      %p160 = scmp.ne.s32.totalorder %s148, %s149
      %p161 = scmp.eq.s32.totalorder %s38, 1
      %p162 = por %p160, %p161
      %p164 = scmp.ne.s32.totalorder %s149, %s163
      %p165 = scmp.eq.s32.totalorder %s38, 0
      %p166 = por %p164, %p165
      %s168 = sadd.s32 %s167, 1
      %p171 = scmp.eq.s32.totalorder %s32, 1
      %p172 = scmp.ne.s32.totalorder %s167, %s169
      %p173 = scmp.eq.s32.totalorder %s32, 0
      %p174 = por %p172, %p173
      %p175 = scmp.ne.s32.totalorder %s167, %s169
      %p176 = scmp.eq.s32.totalorder %s37, 1
      %p177 = por %p175, %p176
      %p178 = scmp.ne.s32.totalorder %s169, %s170
      %p179 = scmp.eq.s32.totalorder %s37, 0
      %p180 = por %p178, %p179
      %p181 = scmp.ne.s32.totalorder %s169, %s170
      %p182 = scmp.eq.s32.totalorder %s38, 1
      %p183 = por %p181, %p182
      %p185 = scmp.ne.s32.totalorder %s170, %s184
      %p186 = scmp.eq.s32.totalorder %s38, 0
      %p187 = por %p185, %p186
      %s189 = sadd.s32 %s188, 1
      %p192 = scmp.eq.s32.totalorder %s32, 1
      %p193 = scmp.ne.s32.totalorder %s188, %s190
      %p194 = scmp.eq.s32.totalorder %s32, 0
      %p195 = por %p193, %p194
      %p196 = scmp.ne.s32.totalorder %s188, %s190
      %p197 = scmp.eq.s32.totalorder %s37, 1
      %p198 = por %p196, %p197
      %p199 = scmp.ne.s32.totalorder %s190, %s191
      %p200 = scmp.eq.s32.totalorder %s37, 0
      %p201 = por %p199, %p200
      %p202 = scmp.ne.s32.totalorder %s190, %s191
      %p203 = scmp.eq.s32.totalorder %s38, 1
      %p204 = por %p202, %p203
      %p206 = scmp.ne.s32.totalorder %s191, %s205
      %p207 = scmp.eq.s32.totalorder %s38, 0
      %p208 = por %p206, %p207
      %s210 = sadd.s32 %s209, 1
      %p213 = scmp.eq.s32.totalorder %s32, 1
      %p214 = scmp.ne.s32.totalorder %s209, %s211
      %p215 = scmp.eq.s32.totalorder %s32, 0
      %p216 = por %p214, %p215
      %p217 = scmp.ne.s32.totalorder %s209, %s211
      %p218 = scmp.eq.s32.totalorder %s37, 1
      %p219 = por %p217, %p218
      %p220 = scmp.ne.s32.totalorder %s211, %s212
      %p221 = scmp.eq.s32.totalorder %s37, 0
      %p222 = por %p220, %p221
      %p223 = scmp.ne.s32.totalorder %s211, %s212
      %p224 = scmp.eq.s32.totalorder %s38, 1
      %p225 = por %p223, %p224
      %p227 = scmp.ne.s32.totalorder %s212, %s226
      %p228 = scmp.eq.s32.totalorder %s38, 0
      %p229 = por %p227, %p228
      %s231 = sadd.s32 %s230, 1
      %p234 = scmp.eq.s32.totalorder %s32, 1
      %p235 = scmp.ne.s32.totalorder %s230, %s232
      %p236 = scmp.eq.s32.totalorder %s32, 0
      %p237 = por %p235, %p236
      %p238 = scmp.ne.s32.totalorder %s230, %s232
      %p239 = scmp.eq.s32.totalorder %s37, 1
      %p240 = por %p238, %p239
      %p241 = scmp.ne.s32.totalorder %s232, %s233
      %p242 = scmp.eq.s32.totalorder %s37, 0
      %p243 = por %p241, %p242
      %p244 = scmp.ne.s32.totalorder %s232, %s233
      %p245 = scmp.eq.s32.totalorder %s38, 1
      %p246 = por %p244, %p245
      %p248 = scmp.ne.s32.totalorder %s233, %s247
      %p249 = scmp.eq.s32.totalorder %s38, 0
      %p250 = por %p248, %p249
      %s252 = sadd.s32 %s251, 1
      %p255 = scmp.eq.s32.totalorder %s32, 1
      %p256 = scmp.ne.s32.totalorder %s251, %s253
      %p257 = scmp.eq.s32.totalorder %s32, 0
      %p258 = por %p256, %p257
      %p259 = scmp.ne.s32.totalorder %s251, %s253
      %p260 = scmp.eq.s32.totalorder %s37, 1
      %p261 = por %p259, %p260
      %p262 = scmp.ne.s32.totalorder %s253, %s254
      %p263 = scmp.eq.s32.totalorder %s37, 0
      %p264 = por %p262, %p263
      %p265 = scmp.ne.s32.totalorder %s253, %s254
      %p266 = scmp.eq.s32.totalorder %s38, 1
      %p267 = por %p265, %p266
      %p269 = scmp.ne.s32.totalorder %s254, %s268
      %p270 = scmp.eq.s32.totalorder %s38, 0
      %p271 = por %p269, %p270
      %s273 = sadd.s32 %s272, 1
      %p276 = scmp.eq.s32.totalorder %s32, 1
      %p277 = scmp.ne.s32.totalorder %s272, %s274
      %p278 = scmp.eq.s32.totalorder %s32, 0
      %p279 = por %p277, %p278
      %p280 = scmp.ne.s32.totalorder %s272, %s274
      %p281 = scmp.eq.s32.totalorder %s37, 1
      %p282 = por %p280, %p281
      %p283 = scmp.ne.s32.totalorder %s274, %s275
      %p284 = scmp.eq.s32.totalorder %s37, 0
      %p285 = por %p283, %p284
      %p286 = scmp.ne.s32.totalorder %s274, %s275
      %p287 = scmp.eq.s32.totalorder %s38, 1
      %p288 = por %p286, %p287
      %p290 = scmp.ne.s32.totalorder %s275, %s289
      %p291 = scmp.eq.s32.totalorder %s38, 0
      %p292 = por %p290, %p291
      %s294 = sadd.s32 %s293, 1
      %p297 = scmp.eq.s32.totalorder %s32, 1
      %p298 = scmp.ne.s32.totalorder %s293, %s295
      %p299 = scmp.eq.s32.totalorder %s32, 0
      %p300 = por %p298, %p299
      %p301 = scmp.ne.s32.totalorder %s293, %s295
      %p302 = scmp.eq.s32.totalorder %s37, 1
      %p303 = por %p301, %p302
      %p304 = scmp.ne.s32.totalorder %s295, %s296
      %p305 = scmp.eq.s32.totalorder %s37, 0
      %p306 = por %p304, %p305
      %p307 = scmp.ne.s32.totalorder %s295, %s296
      %p308 = scmp.eq.s32.totalorder %s38, 1
      %p309 = por %p307, %p308
      %p311 = scmp.ne.s32.totalorder %s296, %s310
      %p312 = scmp.eq.s32.totalorder %s38, 0
      %p313 = por %p311, %p312
      %s315 = sadd.s32 %s314, 1
      %p318 = scmp.eq.s32.totalorder %s32, 1
      %p319 = scmp.ne.s32.totalorder %s314, %s316
      %p320 = scmp.eq.s32.totalorder %s32, 0
      %p321 = por %p319, %p320
      %p322 = scmp.ne.s32.totalorder %s314, %s316
      %p323 = scmp.eq.s32.totalorder %s37, 1
      %p324 = por %p322, %p323
      %p325 = scmp.ne.s32.totalorder %s316, %s317
      %p326 = scmp.eq.s32.totalorder %s37, 0
      %p327 = por %p325, %p326
      %p328 = scmp.ne.s32.totalorder %s316, %s317
      %p329 = scmp.eq.s32.totalorder %s38, 1
      %p330 = por %p328, %p329
      %p332 = scmp.ne.s32.totalorder %s317, %s331
      %p333 = scmp.eq.s32.totalorder %s38, 0
      %p334 = por %p332, %p333
      %s336 = sadd.s32 %s335, 1
      %p339 = scmp.eq.s32.totalorder %s32, 1
      %p340 = scmp.ne.s32.totalorder %s335, %s337
      %p341 = scmp.eq.s32.totalorder %s32, 0
      %p342 = por %p340, %p341
      %p343 = scmp.ne.s32.totalorder %s335, %s337
      %p344 = scmp.eq.s32.totalorder %s37, 1
      %p345 = por %p343, %p344
      %p346 = scmp.ne.s32.totalorder %s337, %s338
      %p347 = scmp.eq.s32.totalorder %s37, 0
      %p348 = por %p346, %p347
      %p349 = scmp.ne.s32.totalorder %s337, %s338
      %p350 = scmp.eq.s32.totalorder %s38, 1
      %p351 = por %p349, %p350
      %p353 = scmp.ne.s32.totalorder %s338, %s352
      %p354 = scmp.eq.s32.totalorder %s38, 0
      %p355 = por %p353, %p354
      %s357 = sadd.s32 %s356, 1
      %p360 = scmp.eq.s32.totalorder %s32, 1
      %p361 = scmp.ne.s32.totalorder %s356, %s358
      %p362 = scmp.eq.s32.totalorder %s32, 0
      %p363 = por %p361, %p362
      %p364 = scmp.ne.s32.totalorder %s356, %s358
      %p365 = scmp.eq.s32.totalorder %s37, 1
      %p366 = por %p364, %p365
      %p367 = scmp.ne.s32.totalorder %s358, %s359
      %p368 = scmp.eq.s32.totalorder %s37, 0
      %p369 = por %p367, %p368
      %p370 = scmp.ne.s32.totalorder %s358, %s359
      %p371 = scmp.eq.s32.totalorder %s38, 1
      %p372 = por %p370, %p371
      %p374 = scmp.ne.s32.totalorder %s359, %s373
      %p375 = scmp.eq.s32.totalorder %s38, 0
      %p376 = por %p374, %p375
      %s378 = sadd.s32 %s377, 1
      %p381 = scmp.eq.s32.totalorder %s32, 1
      %p382 = scmp.ne.s32.totalorder %s377, %s379
      %p383 = scmp.eq.s32.totalorder %s32, 0
      %p384 = por %p382, %p383
      %p385 = scmp.ne.s32.totalorder %s377, %s379
      %p386 = scmp.eq.s32.totalorder %s37, 1
      %p387 = por %p385, %p386
      %p388 = scmp.ne.s32.totalorder %s379, %s380
      %p389 = scmp.eq.s32.totalorder %s37, 0
      %p390 = por %p388, %p389
      %p391 = scmp.ne.s32.totalorder %s379, %s380
      %p392 = scmp.eq.s32.totalorder %s38, 1
      %p393 = por %p391, %p392
      %p395 = scmp.ne.s32.totalorder %s380, %s394
      %p396 = scmp.eq.s32.totalorder %s38, 0
      %p397 = por %p395, %p396
      %s399 = sadd.s32 %s398, 1
      %p402 = scmp.eq.s32.totalorder %s32, 1
      %p403 = scmp.ne.s32.totalorder %s398, %s400
      %p404 = scmp.eq.s32.totalorder %s32, 0
      %p405 = por %p403, %p404
      %p406 = scmp.ne.s32.totalorder %s398, %s400
      %p407 = scmp.eq.s32.totalorder %s37, 1
      %p408 = por %p406, %p407
      %p409 = scmp.ne.s32.totalorder %s400, %s401
      %p410 = scmp.eq.s32.totalorder %s37, 0
      %p411 = por %p409, %p410
      %p412 = scmp.ne.s32.totalorder %s400, %s401
      %p413 = scmp.eq.s32.totalorder %s38, 1
      %p414 = por %p412, %p413
      %p416 = scmp.ne.s32.totalorder %s401, %s415
      %p417 = scmp.eq.s32.totalorder %s38, 0
      %p418 = por %p416, %p417
      %s420 = sadd.s32 %s419, 1
      %p423 = scmp.eq.s32.totalorder %s32, 1
      %p424 = scmp.ne.s32.totalorder %s419, %s421
      %p425 = scmp.eq.s32.totalorder %s32, 0
      %p426 = por %p424, %p425
      %p427 = scmp.ne.s32.totalorder %s419, %s421
      %p428 = scmp.eq.s32.totalorder %s37, 1
      %p429 = por %p427, %p428
      %p430 = scmp.ne.s32.totalorder %s421, %s422
      %p431 = scmp.eq.s32.totalorder %s37, 0
      %p432 = por %p430, %p431
      %p433 = scmp.ne.s32.totalorder %s421, %s422
      %p434 = scmp.eq.s32.totalorder %s38, 1
      %p435 = por %p433, %p434
      %p437 = scmp.ne.s32.totalorder %s422, %s436
      %p438 = scmp.eq.s32.totalorder %s38, 0
      %p439 = por %p437, %p438
      %s440 = ssub.s32 %s39, %s51
      %s441 = ssub.s32 %s40, %s47
      %s442 = sor.u32 %s440, %s441
      %p443 = scmp.eq.s32.totalorder %s442, 0
      %s445 = sadd.s32 %s444, 1
      %s446 = scalar_select %p443, %s444, %s445
      %p449 = pneg %p443
      %p450 = scmp.eq.s32.totalorder %s32, 1
      %p451 = por %p449, %p450
      %p452 = scmp.ne.s32.totalorder %s444, %s447
      %p453 = scmp.eq.s32.totalorder %s32, 0
      %p454 = por %p452, %p453
      %p455 = scmp.ne.s32.totalorder %s444, %s447
      %p456 = scmp.eq.s32.totalorder %s37, 1
      %p457 = por %p455, %p456
      %p458 = scmp.ne.s32.totalorder %s447, %s448
      %p459 = scmp.eq.s32.totalorder %s37, 0
      %p460 = por %p458, %p459
      %p461 = scmp.ne.s32.totalorder %s447, %s448
      %p462 = scmp.eq.s32.totalorder %s38, 1
      %p463 = por %p461, %p462
      %p465 = scmp.ne.s32.totalorder %s448, %s464
      %p466 = scmp.eq.s32.totalorder %s38, 0
      %p467 = por %p465, %p466
      %p468 = scmp.le.s32.totalorder 1, %s32
      %p469 = scmp.lt.s32.totalorder %s32, 3
      %p470 = pnand %p468, %p469
      %p471 = pneg %p470
      // Predicated region
      $region9: #{tpu_custom_call.1} parent=5 // pred_check
        _
      $region10: #{tpu_custom_call.1} parent=5 // pred_check_branch
        %473 = sbr.rel (%p470) target = $region12
      $region11: #{tpu_custom_call.1} parent=5 // pred_region
        %s474 = ssub.s32 %s32, 1
        // Predicated region
        $region13: #{tpu_custom_call.1} parent=11 // pred_check
          %p475 = pneg %p117
        $region14: #{tpu_custom_call.1} parent=11 // pred_check_branch
          %477 = sbr.rel (%p475) target = $region16
        $region15: #{tpu_custom_call.1} parent=11 // pred_region
          _
        $region16: #{tpu_custom_call.1} parent=11 // pred_fallthru
          _
        // Predicated region
        $region17: #{tpu_custom_call.1} parent=11 // pred_check
          %p478 = pneg %p138
        $region18: #{tpu_custom_call.1} parent=11 // pred_check_branch
          %480 = sbr.rel (%p478) target = $region20
        $region19: #{tpu_custom_call.1} parent=11 // pred_region
          _
        $region20: #{tpu_custom_call.1} parent=11 // pred_fallthru
          _
        // Predicated region
        $region21: #{tpu_custom_call.1} parent=11 // pred_check
          %p481 = pneg %p159
        $region22: #{tpu_custom_call.1} parent=11 // pred_check_branch
          %483 = sbr.rel (%p481) target = $region24
        $region23: #{tpu_custom_call.1} parent=11 // pred_region
          _
        $region24: #{tpu_custom_call.1} parent=11 // pred_fallthru
          _
        // Predicated region
        $region25: #{tpu_custom_call.1} parent=11 // pred_check
          %p484 = pneg %p180
        $region26: #{tpu_custom_call.1} parent=11 // pred_check_branch
          %486 = sbr.rel (%p484) target = $region28
        $region27: #{tpu_custom_call.1} parent=11 // pred_region
          _
        $region28: #{tpu_custom_call.1} parent=11 // pred_fallthru
          _
        // Predicated region
        $region29: #{tpu_custom_call.1} parent=11 // pred_check
          %p487 = pneg %p201
        $region30: #{tpu_custom_call.1} parent=11 // pred_check_branch
          %489 = sbr.rel (%p487) target = $region32
        $region31: #{tpu_custom_call.1} parent=11 // pred_region
          _
        $region32: #{tpu_custom_call.1} parent=11 // pred_fallthru
          _
        // Predicated region
        $region33: #{tpu_custom_call.1} parent=11 // pred_check
          %p490 = pneg %p222
        $region34: #{tpu_custom_call.1} parent=11 // pred_check_branch
          %492 = sbr.rel (%p490) target = $region36
        $region35: #{tpu_custom_call.1} parent=11 // pred_region
          _
        $region36: #{tpu_custom_call.1} parent=11 // pred_fallthru
          _
        // Predicated region
        $region37: #{tpu_custom_call.1} parent=11 // pred_check
          %p493 = pneg %p243
        $region38: #{tpu_custom_call.1} parent=11 // pred_check_branch
          %495 = sbr.rel (%p493) target = $region40
        $region39: #{tpu_custom_call.1} parent=11 // pred_region
          %497 = vsyncadd [#allocation10], 0
          %s498 = sshll.u32 %s8, 4
          %s499 = int_to_ptr.hbm [resolvable:$true] %s498
          %s500 = sshll.u32 [#allocation9], 4
          %s501 = int_to_ptr.vmem [resolvable:$true] %s500
          %506 = dma.hbm_to_vmem [thread:$0]  %s499, 256, %s501, [#allocation10], 64, 64, 4
        $region40: #{tpu_custom_call.1} parent=11 // pred_fallthru
          _
        // Predicated region
        $region41: #{tpu_custom_call.1} parent=11 // pred_check
          %p507 = pneg %p264
        $region42: #{tpu_custom_call.1} parent=11 // pred_check_branch
          %509 = sbr.rel (%p507) target = $region44
        $region43: #{tpu_custom_call.1} parent=11 // pred_region
          _
        $region44: #{tpu_custom_call.1} parent=11 // pred_fallthru
          _
        // Predicated region
        $region45: #{tpu_custom_call.1} parent=11 // pred_check
          %p510 = pneg %p285
        $region46: #{tpu_custom_call.1} parent=11 // pred_check_branch
          %512 = sbr.rel (%p510) target = $region48
        $region47: #{tpu_custom_call.1} parent=11 // pred_region
          %514 = vsyncadd [#allocation10], 0
          %s515 = sshll.u32 %s10, 4
          %s516 = int_to_ptr.hbm [resolvable:$true] %s515
          %s517 = sshll.u32 [#allocation11], 4
          %s518 = int_to_ptr.vmem [resolvable:$true] %s517
          %523 = dma.hbm_to_vmem [thread:$0]  %s516, 256, %s518, [#allocation10], 64, 64, 4
        $region48: #{tpu_custom_call.1} parent=11 // pred_fallthru
          _
        // Predicated region
        $region49: #{tpu_custom_call.1} parent=11 // pred_check
          %p524 = pneg %p306
        $region50: #{tpu_custom_call.1} parent=11 // pred_check_branch
          %526 = sbr.rel (%p524) target = $region52
        $region51: #{tpu_custom_call.1} parent=11 // pred_region
          _
        $region52: #{tpu_custom_call.1} parent=11 // pred_fallthru
          _
        // Predicated region
        $region53: #{tpu_custom_call.1} parent=11 // pred_check
          %p527 = pneg %p327
        $region54: #{tpu_custom_call.1} parent=11 // pred_check_branch
          %529 = sbr.rel (%p527) target = $region56
        $region55: #{tpu_custom_call.1} parent=11 // pred_region
          _
        $region56: #{tpu_custom_call.1} parent=11 // pred_fallthru
          _
        // Predicated region
        $region57: #{tpu_custom_call.1} parent=11 // pred_check
          %p530 = pneg %p348
        $region58: #{tpu_custom_call.1} parent=11 // pred_check_branch
          %532 = sbr.rel (%p530) target = $region60
        $region59: #{tpu_custom_call.1} parent=11 // pred_region
          _
        $region60: #{tpu_custom_call.1} parent=11 // pred_fallthru
          _
        // Predicated region
        $region61: #{tpu_custom_call.1} parent=11 // pred_check
          %p533 = pneg %p369
        $region62: #{tpu_custom_call.1} parent=11 // pred_check_branch
          %535 = sbr.rel (%p533) target = $region64
        $region63: #{tpu_custom_call.1} parent=11 // pred_region
          %537 = vsyncadd [#allocation13], 0
          %s538 = sshll.u32 %s14, 4
          %s539 = int_to_ptr.hbm [resolvable:$true] %s538
          %s540 = sshll.u32 [#allocation12], 4
          %s541 = int_to_ptr.vmem [resolvable:$true] %s540
          %546 = dma.hbm_to_vmem [thread:$0]  %s539, 256, %s541, [#allocation13], 64, 64, 4
        $region64: #{tpu_custom_call.1} parent=11 // pred_fallthru
          _
        // Predicated region
        $region65: #{tpu_custom_call.1} parent=11 // pred_check
          %p547 = pneg %p390
        $region66: #{tpu_custom_call.1} parent=11 // pred_check_branch
          %549 = sbr.rel (%p547) target = $region68
        $region67: #{tpu_custom_call.1} parent=11 // pred_region
          _
        $region68: #{tpu_custom_call.1} parent=11 // pred_fallthru
          _
        // Predicated region
        $region69: #{tpu_custom_call.1} parent=11 // pred_check
          %p550 = pneg %p411
        $region70: #{tpu_custom_call.1} parent=11 // pred_check_branch
          %552 = sbr.rel (%p550) target = $region72
        $region71: #{tpu_custom_call.1} parent=11 // pred_region
          _
        $region72: #{tpu_custom_call.1} parent=11 // pred_fallthru
          _
        // Predicated region
        $region73: #{tpu_custom_call.1} parent=11 // pred_check
          %p553 = pneg %p432
        $region74: #{tpu_custom_call.1} parent=11 // pred_check_branch
          %555 = sbr.rel (%p553) target = $region76
        $region75: #{tpu_custom_call.1} parent=11 // pred_region
          _
        $region76: #{tpu_custom_call.1} parent=11 // pred_fallthru
          _
      $region12: #{tpu_custom_call.1} parent=5 // pred_fallthru
        _
      %p556 = scmp.lt.s32.totalorder %s32, 2
      // Predicated region
      $region77: #{tpu_custom_call.1} parent=5 // pred_check
        %p557 = pneg %p556
      $region78: #{tpu_custom_call.1} parent=5 // pred_check_branch
        %559 = sbr.rel (%p557) target = $region80
      $region79: #{tpu_custom_call.1} parent=5 // pred_region
        // Predicated region
        $region81: #{tpu_custom_call.1} parent=79 // pred_check
          %p560 = pneg %p64
        $region82: #{tpu_custom_call.1} parent=79 // pred_check_branch
          %562 = sbr.rel (%p560) target = $region84
        $region83: #{tpu_custom_call.1} parent=79 // pred_region
          %s563 = sand.u32 %s54, 1
          %s564 = scalar_lea.sflag [#allocation7], %s563
          %s565 = sand.u32 %s54, 1
          %s566 = scalar_lea.vmem [#allocation6], %s565
          %568 = vsyncadd %s564, 0
          %s569 = scalar_lea.hbm %s0, %s39
          %s571 = sshll.u32 %s569, 4
          %s572 = int_to_ptr.hbm [resolvable:$true] %s571
          %s573 = sshll.u32 %s566, 4
          %s574 = int_to_ptr.vmem [resolvable:$true] %s573
          %576 = dma.hbm_to_vmem [thread:$0]  %s572, 16, %s574, %s564
        $region84: #{tpu_custom_call.1} parent=79 // pred_fallthru
          _
        // Predicated region
        $region85: #{tpu_custom_call.1} parent=79 // pred_check
          %p577 = pneg %p90
        $region86: #{tpu_custom_call.1} parent=79 // pred_check_branch
          %579 = sbr.rel (%p577) target = $region88
        $region87: #{tpu_custom_call.1} parent=79 // pred_region
          %p580 = scmp.lt.s32.totalorder %s39, 1
          %s581 = scalar_select %p580, %s39, 1
          %s582 = smul.addr %s581, 8
          %s583 = scalar_lea.vmem %s1, %s582
        $region88: #{tpu_custom_call.1} parent=79 // pred_fallthru
          _
      $region80: #{tpu_custom_call.1} parent=5 // pred_fallthru
        _
      %p584 = scmp.le.s32.totalorder 1, %s32
      %p585 = scmp.lt.s32.totalorder %s32, 3
      %p586 = pnand %p584, %p585
      %p587 = pneg %p586
      // Predicated region
      $region89: #{tpu_custom_call.1} parent=5 // pred_check
        _
      $region90: #{tpu_custom_call.1} parent=5 // pred_check_branch
        %589 = sbr.rel (%p586) target = $region92
      $region91: #{tpu_custom_call.1} parent=5 // pred_region
        %s590 = ssub.s32 %s32, 1
        %s591 = sand.u32 %s57, 1
        %s592 = scalar_lea.sflag [#allocation7], %s591
        %s593 = sand.u32 %s57, 1
        %s594 = scalar_lea.vmem [#allocation6], %s593
        // Predicated region
        $region93: #{tpu_custom_call.1} parent=91 // pred_check
          %p595 = pneg %p70
        $region94: #{tpu_custom_call.1} parent=91 // pred_check_branch
          %597 = sbr.rel (%p595) target = $region96
        $region95: #{tpu_custom_call.1} parent=91 // pred_region
          %599 = dma.done %s592, 16
        $region96: #{tpu_custom_call.1} parent=91 // pred_fallthru
          _
        // Predicated region
        $region97: #{tpu_custom_call.1} parent=91 // pred_check
          %p600 = pneg %p243
        $region98: #{tpu_custom_call.1} parent=91 // pred_check_branch
          %602 = sbr.rel (%p600) target = $region100
        $region99: #{tpu_custom_call.1} parent=91 // pred_region
          %604 = dma.done [#allocation10], 256
        $region100: #{tpu_custom_call.1} parent=91 // pred_fallthru
          _
        // Predicated region
        $region101: #{tpu_custom_call.1} parent=91 // pred_check
          %p605 = pneg %p285
        $region102: #{tpu_custom_call.1} parent=91 // pred_check_branch
          %607 = sbr.rel (%p605) target = $region104
        $region103: #{tpu_custom_call.1} parent=91 // pred_region
          %609 = dma.done [#allocation10], 256
        $region104: #{tpu_custom_call.1} parent=91 // pred_fallthru
          _
        // Predicated region
        $region105: #{tpu_custom_call.1} parent=91 // pred_check
          %p610 = pneg %p369
        $region106: #{tpu_custom_call.1} parent=91 // pred_check_branch
          %612 = sbr.rel (%p610) target = $region108
        $region107: #{tpu_custom_call.1} parent=91 // pred_region
          %614 = dma.done [#allocation13], 256
        $region108: #{tpu_custom_call.1} parent=91 // pred_fallthru
          _
        %s615 = sand.u32 %s57, 1
        %s616 = scalar_lea.sflag [#allocation7], %s615
        %s617 = sand.u32 %s57, 1
        %s618 = scalar_lea.vmem [#allocation6], %s617
        %p619 = pneg %p70
        %p620 = pneg %p67
        %p621 = scmp.lt.s32.totalorder %s41, 1
        %s622 = scalar_select %p621, %s41, 1
        %s623 = smul.addr %s622, 8
        %s624 = scalar_lea.vmem %s1, %s623
        %p625 = pneg %p96
        %p626 = pneg %p93
        %p627 = pneg %p117
        %p628 = pneg %p114
        %p629 = pneg %p138
        %p630 = pneg %p135
        %p631 = pneg %p159
        %p632 = pneg %p156
        %p633 = pneg %p180
        %p634 = pneg %p177
        %p635 = pneg %p201
        %p636 = pneg %p198
        %p637 = pneg %p222
        %p638 = pneg %p219
        %p639 = pneg %p243
        %p640 = pneg %p240
        %p641 = pneg %p264
        %p642 = pneg %p261
        %p643 = pneg %p285
        %p644 = pneg %p282
        %p645 = pneg %p306
        %p646 = pneg %p303
        %p647 = pneg %p327
        %p648 = pneg %p324
        %p649 = pneg %p348
        %p650 = pneg %p345
        %p651 = pneg %p369
        %p652 = pneg %p366
        %p653 = pneg %p390
        %p654 = pneg %p387
        %p655 = pneg %p411
        %p656 = pneg %p408
        %p657 = pneg %p432
        %p658 = pneg %p429
        %p659 = pneg %p460
        %p660 = pneg %p457
        %s661 = sand.u32 %s447, 1
        %s662 = scalar_lea.sflag [#allocation8], %s661
        %s663 = sand.u32 %s447, 1
        %s664 = smul.addr %s663, 8
        %s665 = scalar_lea.vmem [#allocation14], %s664
        %p666 = scmp.lt.s32.totalorder %s41, 1
        %s667 = scalar_select %p666, %s41, 1
        %s668 = smul.addr %s667, 8
        %s669 = scalar_lea.vmem %s1, %s668
        %p671 = scmp.eq.s32.totalorder %s42, 0
        // Predicated region
        $region109: #{tpu_custom_call.1} parent=91 // pred_check
          %p672 = pneg %p671
        $region110: #{tpu_custom_call.1} parent=91 // pred_check_branch
          %674 = sbr.rel (%p672) target = $region112
        $region111: #{tpu_custom_call.1} parent=91 // pred_region
          %v675 = vld [vmem:[%s669] sm:$0xff]
          %v676 = vld [vmem:[%s2] sm:$0x1]
          %v677 = vld [vmem:[%s3] sm:$0x1]
          %vm678 = vcmask 261120
          %v679 = vsel %vm678, %v675, 0.0
          %680 = vadd.xlane.f32.xlu0 %v679
          %v681 = vpop.xlane.xlu0 %680
          %v682 = vrcp.pop 32.0
          %v683 = vmul.f32 32.0, %v682
          %v684 = vsub.f32 1.0, %v683
          %v685 = vmul.f32 %v682, %v684
          %v686 = vadd.f32 %v682, %v685
          %vm687 = vweird.f32 %v682
          %v688 = vsel %vm687, %v682, %v686
          %v689 = vmul.f32 %v681, %v688
          %v690 = vsub.f32 %v675, %v689
          %v691 = vmul.f32 %v690, %v690
          %v692 = vsel %vm678, %v691, 0.0
          %693 = vadd.xlane.f32.xlu0 %v692
          %v694 = vpop.xlane.xlu0 %693
          %v695 = vmul.f32 %v694, %v688
          %v696 = vadd.f32 %v695, 1e-05
          %v697 = vrsqrt.pop %v696
          %v698 = vmul.f32 %v697, %v696
          %v699 = vmul.f32 %v698, %v697
          %v700 = vmul.f32 0.5, %v699
          %v701 = vsub.f32 1.5, %v700
          %v702 = vmul.f32 %v697, %v701
          %vm703 = vweird.f32 %v696
          %vm704 = vweird.f32 %v697
          %vm705 = vmor %vm703, %vm704
          %v706 = vsel %vm705, %v697, %v702
          %v707 = vmul.f32 %v690, %v706
          %v709 = vperm.slane %v676, 0
          %v711 = vmul.f32 %v707, %v709
          %v713 = vperm.slane %v677, 0
          %v715 = vadd.f32 %v711, %v713
          %v716 = vpack.c.bf16 %v715, %v715
          %vm717 = vcmask 257024
          %718 = vst.msk [vmem:[#allocation2] sm:$0xf] %vm717, %v716
          %v719 = vld [vmem:[%s6] sm:$0xf]
          %v720 = vld [vmem:[%s6 + $0x4] sm:$0xf]
          %v721 = vld [vmem:[%s6 + $0x8] sm:$0xf]
          %v722 = vld [vmem:[%s6 + $0xc] sm:$0xf]
          %v723 = vld [vmem:[%s7] sm:$0x1]
          %v725 = vperm.slane %v723, 0
          %v731 = vunpack.c.l.b16 %v719
          %v732 = vunpack.c.l.b16 %v720
          %v733 = vunpack.c.l.b16 %v721
          %v734 = vunpack.c.l.b16 %v722
          %v735 = vpack.c.b16 %v732, %v731
          %v736 = vpack.c.b16 %v734, %v733
          %v740 = vsel %vm678, %v716, 0
          %742 = vmatpush.bf16.msra.mxu0 0
          %743 = vmatpush.bf16.msra.mxu0 0
          %744 = vmatpush.bf16.msra.mxu0 0
          %745 = vmatpush.bf16.msra.mxu0 0
          %746 = vmatpush.bf16.msra.mxu0 0
          %747 = vmatpush.bf16.msra.mxu0 0
          %748 = vmatpush.bf16.msra.mxu0 %v736
          %749 = vmatpush.bf16.msra.mxu0 %v735
          %750 = vmatmul.bf16.gmra.mxu0 %v740
          %v751 = vpop.f32.mrf.mxu0
          %v752 = vadd.f32 %v725, %v751
          %v753 = vpop.f32.mrf.mxu0
          %754 = vdwg.mxu0
          %755 = vxpose.xlu0.b32.start [1/16] %v752, 128
          %756 = vxpose.xlu0.b32.cont [2/16] 0.0, 128
          %757 = vxpose.xlu0.b32.cont [3/16] 0.0, 128
          %758 = vxpose.xlu0.b32.cont [4/16] 0.0, 128
          %759 = vxpose.xlu0.b32.cont [5/16] 0.0, 128
          %760 = vxpose.xlu0.b32.cont [6/16] 0.0, 128
          %761 = vxpose.xlu0.b32.cont [7/16] 0.0, 128
          %762 = vxpose.xlu0.b32.cont [8/16] 0.0, 128
          %763 = vxpose.xlu0.b32.cont [9/16] 0.0, 128
          %764 = vxpose.xlu0.b32.cont [10/16] 0.0, 128
          %765 = vxpose.xlu0.b32.cont [11/16] 0.0, 128
          %766 = vxpose.xlu0.b32.cont [12/16] 0.0, 128
          %767 = vxpose.xlu0.b32.cont [13/16] 0.0, 128
          %768 = vxpose.xlu0.b32.cont [14/16] 0.0, 128
          %769 = vxpose.xlu0.b32.cont [15/16] 0.0, 128
          %770 = vxpose.xlu0.b32.end [16/16] 0.0, 128
          %v771 = vpop.trf.xlu0
          %v772 = vpop.trf.xlu0
          %v773 = vpop.trf.xlu0
          %v774 = vpop.trf.xlu0
          %v775 = vpop.trf.xlu0
          %v776 = vpop.trf.xlu0
          %v777 = vpop.trf.xlu0
          %v778 = vpop.trf.xlu0
          %v779 = vpop.trf.xlu0
          %v780 = vpop.trf.xlu0
          %v781 = vpop.trf.xlu0
          %v782 = vpop.trf.xlu0
          %v783 = vpop.trf.xlu0
          %v784 = vpop.trf.xlu0
          %v785 = vpop.trf.xlu0
          %v786 = vpop.trf.xlu0
          %v787 = vpack.c.bf16 %v771, %v771
          %v788 = vpack.c.bf16 %v772, %v772
          %v789 = vpack.c.bf16 %v773, %v773
          %v790 = vpack.c.bf16 %v774, %v774
          %vm791 = vcmask 60416
          %792 = vst.msk [vmem:[#allocation3] sm:$0xf] %vm791, %v787
          %793 = vst.msk [vmem:[#allocation3 + $0x4] sm:$0xf] %vm791, %v788
          %794 = vst.msk [vmem:[#allocation3 + $0x8] sm:$0xf] %vm791, %v789
          %795 = vst.msk [vmem:[#allocation3 + $0xc] sm:$0xf] %vm791, %v790
          %v796 = vld [vmem:[#allocation9] sm:$0xf]
          %v797 = vld [vmem:[#allocation9 + $0x4] sm:$0xf]
          %v798 = vld [vmem:[#allocation9 + $0x8] sm:$0xf]
          %v799 = vld [vmem:[#allocation9 + $0xc] sm:$0xf]
          %v800 = vld [vmem:[%s9] sm:$0x1]
          %v802 = vperm.slane %v800, 0
          %v808 = vunpack.c.l.b16 %v796
          %v809 = vunpack.c.l.b16 %v797
          %v810 = vunpack.c.l.b16 %v798
          %v811 = vunpack.c.l.b16 %v799
          %v812 = vpack.c.b16 %v809, %v808
          %v813 = vpack.c.b16 %v811, %v810
          %816 = vmatpush.bf16.msra.mxu0 0
          %817 = vmatpush.bf16.msra.mxu0 0
          %818 = vmatpush.bf16.msra.mxu0 0
          %819 = vmatpush.bf16.msra.mxu0 0
          %820 = vmatpush.bf16.msra.mxu0 0
          %821 = vmatpush.bf16.msra.mxu0 0
          %822 = vmatpush.bf16.msra.mxu0 %v813
          %823 = vmatpush.bf16.msra.mxu0 %v812
          %824 = vmatmul.bf16.gmra.mxu0 %v740
          %v825 = vpop.f32.mrf.mxu0
          %v826 = vadd.f32 %v802, %v825
          %v827 = vpop.f32.mrf.mxu0
          %828 = vdwg.mxu0
          %v829 = vpack.c.bf16 %v826, %v826
          %830 = vst.msk [vmem:[#allocation4] sm:$0xf] %vm717, %v829
        $region112: #{tpu_custom_call.1} parent=91 // pred_fallthru
          _
        %s831 = smul.u32 %s42, 8
        %s832 = scalar_lea.vmem %s669, %s831
        %v833 = vld [vmem:[%s832] sm:$0xff]
        %s834 = sshra.s32 %s831, 3
        %s835 = sand.u32 %s831, 7
        %s836 = smul.addr %s834, 4
        %s837 = scalar_lea.vmem [#allocation2], %s836
        %v838 = vld [vmem:[%s837] sm:$0xf]
        %v839 = vld [vmem:[%s4] sm:$0xf]
        %v840 = vld [vmem:[%s4 + $0x4] sm:$0xf]
        %v841 = vld [vmem:[%s4 + $0x8] sm:$0xf]
        %v842 = vld [vmem:[%s4 + $0xc] sm:$0xf]
        %v843 = vld [vmem:[%s5] sm:$0x1]
        %v845 = vperm.slane %v843, 0
        %v851 = vunpack.c.l.b16 %v839
        %v852 = vunpack.c.l.b16 %v840
        %v853 = vunpack.c.l.b16 %v841
        %v854 = vunpack.c.l.b16 %v842
        %v855 = vpack.c.b16 %v852, %v851
        %v856 = vpack.c.b16 %v854, %v853
        %vm859 = vcmask 261120
        %v861 = vsel %vm859, %v838, 0
        %863 = vmatpush.bf16.msra.mxu0 0
        %864 = vmatpush.bf16.msra.mxu0 0
        %865 = vmatpush.bf16.msra.mxu0 0
        %866 = vmatpush.bf16.msra.mxu0 0
        %867 = vmatpush.bf16.msra.mxu0 0
        %868 = vmatpush.bf16.msra.mxu0 0
        %869 = vmatpush.bf16.msra.mxu0 %v856
        %870 = vmatpush.bf16.msra.mxu0 %v855
        %871 = vmatmul.bf16.gmra.mxu0 %v861
        %v872 = vpop.f32.mrf.mxu0
        %v873 = vadd.f32 %v845, %v872
        %v874 = vpop.f32.mrf.mxu0
        %875 = vdwg.mxu0
        %v876 = vpack.c.bf16 %v873, %v873
        %v877 = vld [vmem:[%s594] sm:$0x1]
        %v879 = vperm.slane %v877, 0
        %v881 = vld [vmem:[#allocation3] sm:$0xf]
        %vm882 = vcmask 64512
        %v884 = vsel %vm882, %v876, 0
        %vm886 = vcmask 1043456
        %v888 = vsel %vm886, %v881, 0
        %890 = vmatpush.bf16.msra.mxu0 0
        %891 = vmatpush.bf16.msra.mxu0 0
        %892 = vmatpush.bf16.msra.mxu0 0
        %893 = vmatpush.bf16.msra.mxu0 0
        %894 = vmatpush.bf16.msra.mxu0 0
        %895 = vmatpush.bf16.msra.mxu0 0
        %896 = vmatpush.bf16.msra.mxu0 0
        %897 = vmatpush.bf16.msra.mxu0 %v888
        %898 = vmatmul.bf16.gmra.mxu0 %v884
        %v899 = vpop.f32.mrf.mxu0
        %v900 = vadd.f32 %v879, %v899
        %v901 = vpop.f32.mrf.mxu0
        %902 = vdwg.mxu0
        %v903 = vsel %vm882, %v900, -inf
        %904 = vmax.xlane.f32.xlu0 %v903
        %v905 = vpop.xlane.xlu0 %904
        %v906 = vsub.f32 %v900, %v905
        %v907 = vmul.f32 %v906, 1.442695
        %v908 = vpow.pop %v907
        %v909 = vsel %vm882, %v908, 0.0
        %910 = vadd.xlane.f32.xlu0 %v909
        %v911 = vpop.xlane.xlu0 %910
        %v912 = vmax.f32 %v911, 1e-20
        %v913 = vrcp.pop %v912
        %v914 = vmul.f32 %v908, %v913
        %v915 = vpack.c.bf16 %v914, %v914
        %v916 = vld [vmem:[#allocation4] sm:$0xf]
        %v918 = vsel %vm882, %v915, 0
        %v921 = vsel %vm886, %v916, 0
        %923 = vmatpush.bf16.msra.mxu0 0
        %924 = vmatpush.bf16.msra.mxu0 0
        %925 = vmatpush.bf16.msra.mxu0 0
        %926 = vmatpush.bf16.msra.mxu0 0
        %927 = vmatpush.bf16.msra.mxu0 0
        %928 = vmatpush.bf16.msra.mxu0 0
        %929 = vmatpush.bf16.msra.mxu0 0
        %930 = vmatpush.bf16.msra.mxu0 %v921
        %931 = vmatmul.bf16.gmra.mxu0 %v918
        %v932 = vpop.f32.mrf.mxu0
        %v933 = vadd.f32 0.0, %v932
        %v934 = vpop.f32.mrf.mxu0
        %935 = vdwg.mxu0
        %v936 = vpack.c.bf16 %v933, %v933
        %vm937 = vcmask 60416
        %938 = vst.msk [vmem:[#allocation5] sm:$0xf] %vm937, %v936
        %v939 = vld [vmem:[#allocation3 + $0x4] sm:$0xf]
        %v941 = vunpack.c.l.b16 %v876
        %v942 = vpack.c.b16 %v941, %v941
        %943 = vrot.lane.b32.xlu0 %v942, 120
        %v944 = vpop.permute.xlu0 %943
        %v946 = vsel %vm882, %v944, 0
        %v949 = vsel %vm886, %v939, 0
        %951 = vmatpush.bf16.msra.mxu0 0
        %952 = vmatpush.bf16.msra.mxu0 0
        %953 = vmatpush.bf16.msra.mxu0 0
        %954 = vmatpush.bf16.msra.mxu0 0
        %955 = vmatpush.bf16.msra.mxu0 0
        %956 = vmatpush.bf16.msra.mxu0 0
        %957 = vmatpush.bf16.msra.mxu0 0
        %958 = vmatpush.bf16.msra.mxu0 %v949
        %959 = vmatmul.bf16.gmra.mxu0 %v946
        %v960 = vpop.f32.mrf.mxu0
        %v961 = vadd.f32 %v879, %v960
        %v962 = vpop.f32.mrf.mxu0
        %963 = vdwg.mxu0
        %v964 = vsel %vm882, %v961, -inf
        %965 = vmax.xlane.f32.xlu0 %v964
        %v966 = vpop.xlane.xlu0 %965
        %v967 = vsub.f32 %v961, %v966
        %v968 = vmul.f32 %v967, 1.442695
        %v969 = vpow.pop %v968
        %v970 = vsel %vm882, %v969, 0.0
        %971 = vadd.xlane.f32.xlu0 %v970
        %v972 = vpop.xlane.xlu0 %971
        %v973 = vmax.f32 %v972, 1e-20
        %v974 = vrcp.pop %v973
        %v975 = vmul.f32 %v969, %v974
        %v976 = vpack.c.bf16 %v975, %v975
        %v977 = vld [vmem:[#allocation4] sm:$0xf]
        %v979 = vunpack.c.l.b16 %v977
        %v980 = vpack.c.b16 %v979, %v979
        %981 = vrot.lane.b32.xlu0 %v980, 120
        %v982 = vpop.permute.xlu0 %981
        %v984 = vsel %vm882, %v976, 0
        %v987 = vsel %vm886, %v982, 0
        %989 = vmatpush.bf16.msra.mxu0 0
        %990 = vmatpush.bf16.msra.mxu0 0
        %991 = vmatpush.bf16.msra.mxu0 0
        %992 = vmatpush.bf16.msra.mxu0 0
        %993 = vmatpush.bf16.msra.mxu0 0
        %994 = vmatpush.bf16.msra.mxu0 0
        %995 = vmatpush.bf16.msra.mxu0 0
        %996 = vmatpush.bf16.msra.mxu0 %v987
        %997 = vmatmul.bf16.gmra.mxu0 %v984
        %v998 = vpop.f32.mrf.mxu0
        %v999 = vadd.f32 0.0, %v998
        %v1000 = vpop.f32.mrf.mxu0
        %1001 = vdwg.mxu0
        %v1002 = vpack.c.bf16 %v999, %v999
        %1004 = vrot.lane.b32.xlu0 %v1002, 8
        %v1005 = vpop.permute.xlu0 %1004
        %vm1007 = vcmask 126016
        %1008 = vst.msk [vmem:[#allocation5] sm:$0xf] %vm1007, %v1005
        %v1009 = vld [vmem:[#allocation3 + $0x8] sm:$0xf]
        %1010 = vrot.lane.b32.xlu0 %v942, 112
        %v1011 = vpop.permute.xlu0 %1010
        %v1013 = vsel %vm882, %v1011, 0
        %v1016 = vsel %vm886, %v1009, 0
        %1018 = vmatpush.bf16.msra.mxu0 0
        %1019 = vmatpush.bf16.msra.mxu0 0
        %1020 = vmatpush.bf16.msra.mxu0 0
        %1021 = vmatpush.bf16.msra.mxu0 0
        %1022 = vmatpush.bf16.msra.mxu0 0
        %1023 = vmatpush.bf16.msra.mxu0 0
        %1024 = vmatpush.bf16.msra.mxu0 0
        %1025 = vmatpush.bf16.msra.mxu0 %v1016
        %1026 = vmatmul.bf16.gmra.mxu0 %v1013
        %v1027 = vpop.f32.mrf.mxu0
        %v1028 = vadd.f32 %v879, %v1027
        %v1029 = vpop.f32.mrf.mxu0
        %1030 = vdwg.mxu0
        %v1031 = vsel %vm882, %v1028, -inf
        %1032 = vmax.xlane.f32.xlu0 %v1031
        %v1033 = vpop.xlane.xlu0 %1032
        %v1034 = vsub.f32 %v1028, %v1033
        %v1035 = vmul.f32 %v1034, 1.442695
        %v1036 = vpow.pop %v1035
        %v1037 = vsel %vm882, %v1036, 0.0
        %1038 = vadd.xlane.f32.xlu0 %v1037
        %v1039 = vpop.xlane.xlu0 %1038
        %v1040 = vmax.f32 %v1039, 1e-20
        %v1041 = vrcp.pop %v1040
        %v1042 = vmul.f32 %v1036, %v1041
        %v1043 = vpack.c.bf16 %v1042, %v1042
        %v1044 = vld [vmem:[#allocation4] sm:$0xf]
        %v1046 = vunpack.c.l.b16 %v1044
        %v1047 = vpack.c.b16 %v1046, %v1046
        %1048 = vrot.lane.b32.xlu0 %v1047, 112
        %v1049 = vpop.permute.xlu0 %1048
        %v1051 = vsel %vm882, %v1043, 0
        %v1054 = vsel %vm886, %v1049, 0
        %1056 = vmatpush.bf16.msra.mxu0 0
        %1057 = vmatpush.bf16.msra.mxu0 0
        %1058 = vmatpush.bf16.msra.mxu0 0
        %1059 = vmatpush.bf16.msra.mxu0 0
        %1060 = vmatpush.bf16.msra.mxu0 0
        %1061 = vmatpush.bf16.msra.mxu0 0
        %1062 = vmatpush.bf16.msra.mxu0 0
        %1063 = vmatpush.bf16.msra.mxu0 %v1054
        %1064 = vmatmul.bf16.gmra.mxu0 %v1051
        %v1065 = vpop.f32.mrf.mxu0
        %v1066 = vadd.f32 0.0, %v1065
        %v1067 = vpop.f32.mrf.mxu0
        %1068 = vdwg.mxu0
        %v1069 = vpack.c.bf16 %v1066, %v1066
        %1071 = vrot.lane.b32.xlu0 %v1069, 16
        %v1072 = vpop.permute.xlu0 %1071
        %vm1074 = vcmask 191616
        %1075 = vst.msk [vmem:[#allocation5] sm:$0xf] %vm1074, %v1072
        %v1076 = vld [vmem:[#allocation3 + $0xc] sm:$0xf]
        %1077 = vrot.lane.b32.xlu0 %v942, 104
        %v1078 = vpop.permute.xlu0 %1077
        %v1080 = vsel %vm882, %v1078, 0
        %v1083 = vsel %vm886, %v1076, 0
        %1085 = vmatpush.bf16.msra.mxu0 0
        %1086 = vmatpush.bf16.msra.mxu0 0
        %1087 = vmatpush.bf16.msra.mxu0 0
        %1088 = vmatpush.bf16.msra.mxu0 0
        %1089 = vmatpush.bf16.msra.mxu0 0
        %1090 = vmatpush.bf16.msra.mxu0 0
        %1091 = vmatpush.bf16.msra.mxu0 0
        %1092 = vmatpush.bf16.msra.mxu0 %v1083
        %1093 = vmatmul.bf16.gmra.mxu0 %v1080
        %v1094 = vpop.f32.mrf.mxu0
        %v1095 = vadd.f32 %v879, %v1094
        %v1096 = vpop.f32.mrf.mxu0
        %1097 = vdwg.mxu0
        %v1098 = vsel %vm882, %v1095, -inf
        %1099 = vmax.xlane.f32.xlu0 %v1098
        %v1100 = vpop.xlane.xlu0 %1099
        %v1101 = vsub.f32 %v1095, %v1100
        %v1102 = vmul.f32 %v1101, 1.442695
        %v1103 = vpow.pop %v1102
        %v1104 = vsel %vm882, %v1103, 0.0
        %1105 = vadd.xlane.f32.xlu0 %v1104
        %v1106 = vpop.xlane.xlu0 %1105
        %v1107 = vmax.f32 %v1106, 1e-20
        %v1108 = vrcp.pop %v1107
        %v1109 = vmul.f32 %v1103, %v1108
        %v1110 = vpack.c.bf16 %v1109, %v1109
        %v1111 = vld [vmem:[#allocation4] sm:$0xf]
        %v1113 = vunpack.c.l.b16 %v1111
        %v1114 = vpack.c.b16 %v1113, %v1113
        %1115 = vrot.lane.b32.xlu0 %v1114, 104
        %v1116 = vpop.permute.xlu0 %1115
        %v1118 = vsel %vm882, %v1110, 0
        %v1121 = vsel %vm886, %v1116, 0
        %1123 = vmatpush.bf16.msra.mxu0 0
        %1124 = vmatpush.bf16.msra.mxu0 0
        %1125 = vmatpush.bf16.msra.mxu0 0
        %1126 = vmatpush.bf16.msra.mxu0 0
        %1127 = vmatpush.bf16.msra.mxu0 0
        %1128 = vmatpush.bf16.msra.mxu0 0
        %1129 = vmatpush.bf16.msra.mxu0 0
        %1130 = vmatpush.bf16.msra.mxu0 %v1121
        %1131 = vmatmul.bf16.gmra.mxu0 %v1118
        %v1132 = vpop.f32.mrf.mxu0
        %v1133 = vadd.f32 0.0, %v1132
        %v1134 = vpop.f32.mrf.mxu0
        %1135 = vdwg.mxu0
        %v1136 = vpack.c.bf16 %v1133, %v1133
        %1138 = vrot.lane.b32.xlu0 %v1136, 24
        %v1139 = vpop.permute.xlu0 %1138
        %vm1141 = vcmask 257216
        %1142 = vst.msk [vmem:[#allocation5] sm:$0xf] %vm1141, %v1139
        %v1143 = vld [vmem:[#allocation5] sm:$0xf]
        %v1144 = vld [vmem:[#allocation11] sm:$0xf]
        %v1145 = vld [vmem:[#allocation11 + $0x4] sm:$0xf]
        %v1146 = vld [vmem:[#allocation11 + $0x8] sm:$0xf]
        %v1147 = vld [vmem:[#allocation11 + $0xc] sm:$0xf]
        %v1148 = vld [vmem:[%s11] sm:$0x1]
        %v1150 = vperm.slane %v1148, 0
        %v1156 = vunpack.c.l.b16 %v1144
        %v1157 = vunpack.c.l.b16 %v1145
        %v1158 = vunpack.c.l.b16 %v1146
        %v1159 = vunpack.c.l.b16 %v1147
        %v1160 = vpack.c.b16 %v1157, %v1156
        %v1161 = vpack.c.b16 %v1159, %v1158
        %v1165 = vsel %vm859, %v1143, 0
        %1167 = vmatpush.bf16.msra.mxu0 0
        %1168 = vmatpush.bf16.msra.mxu0 0
        %1169 = vmatpush.bf16.msra.mxu0 0
        %1170 = vmatpush.bf16.msra.mxu0 0
        %1171 = vmatpush.bf16.msra.mxu0 0
        %1172 = vmatpush.bf16.msra.mxu0 0
        %1173 = vmatpush.bf16.msra.mxu0 %v1161
        %1174 = vmatpush.bf16.msra.mxu0 %v1160
        %1175 = vmatmul.bf16.gmra.mxu0 %v1165
        %v1176 = vpop.f32.mrf.mxu0
        %v1177 = vadd.f32 %v1150, %v1176
        %v1178 = vpop.f32.mrf.mxu0
        %1179 = vdwg.mxu0
        %v1180 = vadd.f32 %v833, %v1177
        %v1181 = vld [vmem:[%s12] sm:$0x1]
        %v1182 = vld [vmem:[%s13] sm:$0x1]
        %v1183 = vsel %vm859, %v1180, 0.0
        %1184 = vadd.xlane.f32.xlu0 %v1183
        %v1185 = vpop.xlane.xlu0 %1184
        %v1186 = vrcp.pop 32.0
        %v1187 = vmul.f32 32.0, %v1186
        %v1188 = vsub.f32 1.0, %v1187
        %v1189 = vmul.f32 %v1186, %v1188
        %v1190 = vadd.f32 %v1186, %v1189
        %vm1191 = vweird.f32 %v1186
        %v1192 = vsel %vm1191, %v1186, %v1190
        %v1193 = vmul.f32 %v1185, %v1192
        %v1194 = vsub.f32 %v1180, %v1193
        %v1195 = vmul.f32 %v1194, %v1194
        %v1196 = vsel %vm859, %v1195, 0.0
        %1197 = vadd.xlane.f32.xlu0 %v1196
        %v1198 = vpop.xlane.xlu0 %1197
        %v1199 = vmul.f32 %v1198, %v1192
        %v1200 = vadd.f32 %v1199, 1e-05
        %v1201 = vrsqrt.pop %v1200
        %v1202 = vmul.f32 %v1201, %v1200
        %v1203 = vmul.f32 %v1202, %v1201
        %v1204 = vmul.f32 0.5, %v1203
        %v1205 = vsub.f32 1.5, %v1204
        %v1206 = vmul.f32 %v1201, %v1205
        %vm1207 = vweird.f32 %v1200
        %vm1208 = vweird.f32 %v1201
        %vm1209 = vmor %vm1207, %vm1208
        %v1210 = vsel %vm1209, %v1201, %v1206
        %v1211 = vmul.f32 %v1194, %v1210
        %v1213 = vperm.slane %v1181, 0
        %v1215 = vmul.f32 %v1211, %v1213
        %v1217 = vperm.slane %v1182, 0
        %v1219 = vadd.f32 %v1215, %v1217
        %v1220 = vpack.c.bf16 %v1219, %v1219
        %v1221 = vld [vmem:[#allocation12] sm:$0xf]
        %v1222 = vld [vmem:[#allocation12 + $0x4] sm:$0xf]
        %v1223 = vld [vmem:[#allocation12 + $0x8] sm:$0xf]
        %v1224 = vld [vmem:[#allocation12 + $0xc] sm:$0xf]
        %v1225 = vld [vmem:[%s15] sm:$0x1]
        %v1227 = vperm.slane %v1225, 0
        %v1233 = vunpack.c.l.b16 %v1221
        %v1234 = vunpack.c.l.b16 %v1222
        %v1235 = vunpack.c.l.b16 %v1223
        %v1236 = vunpack.c.l.b16 %v1224
        %v1237 = vpack.c.b16 %v1234, %v1233
        %v1238 = vpack.c.b16 %v1236, %v1235
        %v1242 = vsel %vm859, %v1220, 0
        %1244 = vmatpush.bf16.msra.mxu0 0
        %1245 = vmatpush.bf16.msra.mxu0 0
        %1246 = vmatpush.bf16.msra.mxu0 0
        %1247 = vmatpush.bf16.msra.mxu0 0
        %1248 = vmatpush.bf16.msra.mxu0 0
        %1249 = vmatpush.bf16.msra.mxu0 0
        %1250 = vmatpush.bf16.msra.mxu0 %v1238
        %1251 = vmatpush.bf16.msra.mxu0 %v1237
        %1252 = vmatmul.bf16.gmra.mxu0 %v1242
        %v1253 = vpop.f32.mrf.mxu0
        %v1254 = vadd.f32 %v1227, %v1253
        %v1255 = vpop.f32.mrf.mxu0
        %1256 = vdwg.mxu0
        %v1257 = vmax.f32 %v1254, 0.0
        %v1258 = vpack.c.bf16 %v1257, %v1257
        %v1259 = vld [vmem:[%s16] sm:$0xf]
        %v1260 = vld [vmem:[%s16 + $0x4] sm:$0xf]
        %v1261 = vld [vmem:[%s16 + $0x8] sm:$0xf]
        %v1262 = vld [vmem:[%s16 + $0xc] sm:$0xf]
        %v1263 = vld [vmem:[%s16 + $0x10] sm:$0xf]
        %v1264 = vld [vmem:[%s16 + $0x14] sm:$0xf]
        %v1265 = vld [vmem:[%s16 + $0x18] sm:$0xf]
        %v1266 = vld [vmem:[%s16 + $0x1c] sm:$0xf]
        %v1275 = vunpack.c.l.b16 %v1259
        %v1276 = vunpack.c.l.b16 %v1260
        %v1277 = vunpack.c.l.b16 %v1261
        %v1278 = vunpack.c.l.b16 %v1262
        %v1279 = vunpack.c.l.b16 %v1263
        %v1280 = vunpack.c.l.b16 %v1264
        %v1281 = vunpack.c.l.b16 %v1265
        %v1282 = vunpack.c.l.b16 %v1266
        %v1283 = vpack.c.b16 %v1276, %v1275
        %v1284 = vpack.c.b16 %v1278, %v1277
        %v1285 = vpack.c.b16 %v1280, %v1279
        %v1286 = vpack.c.b16 %v1282, %v1281
        %vm1291 = vcmask 523264
        %v1293 = vsel %vm1291, %v1258, 0
        %1295 = vmatpush.bf16.msra.mxu0 0
        %1296 = vmatpush.bf16.msra.mxu0 0
        %1297 = vmatpush.bf16.msra.mxu0 0
        %1298 = vmatpush.bf16.msra.mxu0 0
        %1299 = vmatpush.bf16.msra.mxu0 %v1286
        %1300 = vmatpush.bf16.msra.mxu0 %v1285
        %1301 = vmatpush.bf16.msra.mxu0 %v1284
        %1302 = vmatpush.bf16.msra.mxu0 %v1283
        %1303 = vmatmul.bf16.gmra.mxu0 %v1293
        %v1304 = vpop.f32.mrf.mxu0
        %v1305 = vadd.f32 0.0, %v1304
        %v1306 = vpop.f32.mrf.mxu0
        %1307 = vdwg.mxu0
        %v1308 = vadd.f32 %v1180, %v1305
        %v1309 = vld [vmem:[%s17] sm:$0x1]
        %v1311 = vperm.slane %v1309, 0
        %v1313 = vadd.f32 %v1308, %v1311
        %1314 = vst.msk [vmem:[%s665] sm:$0xff] %vm859, %v1313
        %s1315 = sand.u32 %s447, 1
        %s1316 = scalar_lea.sflag [#allocation8], %s1315
        %s1317 = sand.u32 %s447, 1
        %s1318 = smul.addr %s1317, 8
        %s1319 = scalar_lea.vmem [#allocation14], %s1318
        // Predicated region
        $region113: #{tpu_custom_call.1} parent=91 // pred_check
          %p1320 = pneg %p457
        $region114: #{tpu_custom_call.1} parent=91 // pred_check_branch
          %1322 = sbr.rel (%p1320) target = $region116
        $region115: #{tpu_custom_call.1} parent=91 // pred_region
          %1324 = vsyncadd %s1316, 0
          %s1325 = sadd.s32 %s42, %s41
          %s1326 = smul.addr %s1325, 8
          %s1327 = scalar_lea.hbm %s18, %s1326
          %s1329 = sshll.u32 %s1319, 4
          %s1330 = int_to_ptr.vmem [resolvable:$true] %s1329
          %s1331 = sshll.u32 %s1327, 4
          %s1332 = int_to_ptr.hbm [resolvable:$true] %s1331
          %1334 = dma.vmem_to_hbm [thread:$0]  %s1330, 128, %s1332, %s1316
        $region116: #{tpu_custom_call.1} parent=91 // pred_fallthru
          _
      $region92: #{tpu_custom_call.1} parent=5 // pred_fallthru
        _
      %p1335 = scmp.le.s32.totalorder 2, %s32
      // Predicated region
      $region117: #{tpu_custom_call.1} parent=5 // pred_check
        %p1336 = pneg %p1335
      $region118: #{tpu_custom_call.1} parent=5 // pred_check_branch
        %1338 = sbr.rel (%p1336) target = $region120
      $region119: #{tpu_custom_call.1} parent=5 // pred_region
        %s1339 = ssub.s32 %s32, 2
        // Predicated region
        $region121: #{tpu_custom_call.1} parent=119 // pred_check
          %p1340 = pneg %p463
        $region122: #{tpu_custom_call.1} parent=119 // pred_check_branch
          %1342 = sbr.rel (%p1340) target = $region124
        $region123: #{tpu_custom_call.1} parent=119 // pred_region
          %s1343 = sand.u32 %s448, 1
          %s1344 = scalar_lea.sflag [#allocation8], %s1343
          %s1345 = sand.u32 %s448, 1
          %s1346 = smul.addr %s1345, 8
          %s1347 = scalar_lea.vmem [#allocation14], %s1346
          %1349 = dma.done %s1344, 128
        $region124: #{tpu_custom_call.1} parent=119 // pred_fallthru
          _
      $region120: #{tpu_custom_call.1} parent=5 // pred_fallthru
        _
    $region6: #{tpu_custom_call.1} parent=1 // loop_footer
      %s36 = sadd.s32 1, %s32
    $region7: #{tpu_custom_call.1} parent=1 // loop_footer_branch
      %31 = sbr.rel target = $region3
    $region8: #{tpu_custom_call.1} parent=1 // loop_exit
      _
    %1350 = vsyncpa [#allocation7], 1
    %s1351 = scalar_lea.sflag [#allocation7], 1
    %1352 = vsyncpa %s1351, 1
    %1353 = vsyncpa [#allocation10], 1
    %1354 = vsyncpa [#allocation13], 1
    %1355 = vsyncpa [#allocation8], 1
    %s1356 = scalar_lea.sflag [#allocation8], 1
    %1357 = vsyncpa %s1356, 1

</llo_original>
